<compile_context>
chip_gen: v6e
topology: v6e:2x2x1
jax: 0.10.0
libtpu: 0.0.40
codegen_flags: <defaults>
</compile_context>

<pallas_src>
import functools

import jax
import jax.numpy as jnp
from jax.experimental import pallas as pl
from jax.experimental.pallas import tpu as pltpu

D_MODEL = 32
NHEAD = 4
HEAD_DIM = D_MODEL // NHEAD
D_FF = 64
NUM_OUTPUT = 1
LN_EPS = 1e-5

_ROWS_MAX = 1024             # target rows (= tb*S) per grid step
_VEC_W = 3 * D_MODEL         # width of the packed bias/gain table (96)

# Row indices of the packed "vecs" parameter table.
(_ROW_BQKV, _ROW_BO, _ROW_G1, _ROW_BE1, _ROW_BF1,
 _ROW_BF2, _ROW_WVAL, _ROW_BVAL) = range(8)


def _normalize(x):
    """LayerNorm without affine (affine applied / folded by the caller)."""
    mu = jnp.mean(x, axis=-1, keepdims=True)
    var = jnp.mean((x - mu) ** 2, axis=-1, keepdims=True)
    return (x - mu) * jax.lax.rsqrt(var + LN_EPS)


def critic_kernel(x_ref, wqkv_ref, wo_ref, w1_ref, w2_ref, vecs_ref, out_ref,
                  *, tb, seq):
    rows = tb * seq
    x = x_ref[...]                                         # (rows, D) f32

    vecs = vecs_ref[...]                                   # (8, 96) f32
    bqkv = vecs[_ROW_BQKV:_ROW_BQKV + 1, :3 * D_MODEL]     # (1, 96)
    bo = vecs[_ROW_BO:_ROW_BO + 1, :D_MODEL]
    g1 = vecs[_ROW_G1:_ROW_G1 + 1, :D_MODEL]
    be1 = vecs[_ROW_BE1:_ROW_BE1 + 1, :D_MODEL]
    bf1 = vecs[_ROW_BF1:_ROW_BF1 + 1, :D_FF]
    bf2 = vecs[_ROW_BF2:_ROW_BF2 + 1, :D_MODEL]
    wval = vecs[_ROW_WVAL:_ROW_WVAL + 1, :D_MODEL]         # (1, D)  (g2 folded)
    bval = vecs[_ROW_BVAL:_ROW_BVAL + 1, :1]               # (1, 1)  (be2 folded)

    # --- fused QKV projection (bf16 operands, f32 accumulation) ----------
    qkv = jnp.dot(x.astype(jnp.bfloat16), wqkv_ref[...],
                  preferred_element_type=jnp.float32) + bqkv
    q3 = qkv[:, 0:D_MODEL].reshape(tb, seq, D_MODEL)       # scale pre-folded
    k3 = qkv[:, D_MODEL:2 * D_MODEL].reshape(tb, seq, D_MODEL)
    v3 = qkv[:, 2 * D_MODEL:3 * D_MODEL].reshape(tb, seq, D_MODEL)

    # --- multi-head self-attention: heads folded into the batch axis -----
    def fold_heads(z):                                     # (tb,S,D) -> (H*tb,S,HD)
        return jnp.concatenate(
            [z[:, :, h * HEAD_DIM:(h + 1) * HEAD_DIM] for h in range(NHEAD)],
            axis=0).astype(jnp.bfloat16)

    qh, kh, vh = fold_heads(q3), fold_heads(k3), fold_heads(v3)
    s = jnp.einsum('bqd,bkd->bqk', qh, kh,
                   preferred_element_type=jnp.float32)     # (H*tb, S, S) f32
    s = s - jnp.max(s, axis=-1, keepdims=True)
    p = jnp.exp(s)
    p = p * pl.reciprocal(jnp.sum(p, axis=-1, keepdims=True), approx=True)
    ctx = jnp.einsum('bqk,bkd->bqd', p.astype(jnp.bfloat16), vh,
                     preferred_element_type=jnp.float32)   # (H*tb, S, HD)
    attn = jnp.concatenate(
        [ctx[h * tb:(h + 1) * tb] for h in range(NHEAD)],
        axis=-1).reshape(rows, D_MODEL)
    attn = jnp.dot(attn.astype(jnp.bfloat16), wo_ref[...],
                   preferred_element_type=jnp.float32) + bo

    # --- add & norm 1 -----------------------------------------------------
    x1 = _normalize(x + attn) * g1 + be1

    # --- feed-forward (ReLU), bf16 matmuls --------------------------------
    h1 = jnp.dot(x1.astype(jnp.bfloat16), w1_ref[...],
                 preferred_element_type=jnp.float32) + bf1
    h1 = jnp.maximum(h1, 0.0)
    h2 = jnp.dot(h1.astype(jnp.bfloat16), w2_ref[...],
                 preferred_element_type=jnp.float32) + bf2

    # --- add & norm 2 (affine folded into the value head) -----------------
    x2 = _normalize(x1 + h2)

    # --- value head: VPU multiply + lane reduce, lane-dense store ---------
    val = jnp.sum(x2 * wval, axis=-1, keepdims=True) + bval      # (rows, 1)
    out_ref[...] = jnp.transpose(val)[None, :, :]                # (1, 1, rows)


def init_params(key):
    """Deterministic synthetic parameters.  Weights stored (in, out)."""
    ks = jax.random.split(key, 12)
    sc = 0.05
    return {
        "wq": jax.random.normal(ks[0], (D_MODEL, D_MODEL), jnp.float32) * sc,
        "bq": jnp.zeros((1, D_MODEL), jnp.float32),
        "wk": jax.random.normal(ks[1], (D_MODEL, D_MODEL), jnp.float32) * sc,
        "bk": jnp.zeros((1, D_MODEL), jnp.float32),
        "wv": jax.random.normal(ks[2], (D_MODEL, D_MODEL), jnp.float32) * sc,
        "bv": jnp.zeros((1, D_MODEL), jnp.float32),
        "wo": jax.random.normal(ks[3], (D_MODEL, D_MODEL), jnp.float32) * sc,
        "bo": jnp.zeros((1, D_MODEL), jnp.float32),
        "g1": jnp.ones((1, D_MODEL), jnp.float32),
        "be1": jnp.zeros((1, D_MODEL), jnp.float32),
        "w1": jax.random.normal(ks[4], (D_MODEL, D_FF), jnp.float32) * sc,
        "bf1": jax.random.normal(ks[5], (1, D_FF), jnp.float32) * sc,
        "w2": jax.random.normal(ks[6], (D_FF, D_MODEL), jnp.float32) * sc,
        "bf2": jax.random.normal(ks[7], (1, D_MODEL), jnp.float32) * sc,
        "g2": jnp.ones((1, D_MODEL), jnp.float32),
        "be2": jnp.zeros((1, D_MODEL), jnp.float32),
        "wval": jax.random.normal(ks[8], (D_MODEL, NUM_OUTPUT), jnp.float32) * sc,
        "bval": jax.random.normal(ks[9], (1, NUM_OUTPUT), jnp.float32) * sc,
    }


def _pack_params(p):
    """Fuse QKV (with softmax scale), fold LN2 affine into the value head,
    cast matmul weights to bf16, pack small vectors into one (8, 96) table."""
    scale = 1.0 / (HEAD_DIM ** 0.5)
    wqkv = jnp.concatenate([p["wq"] * scale, p["wk"], p["wv"]], axis=1)
    wqkv = wqkv.astype(jnp.bfloat16)                               # (D, 3D)
    wo = p["wo"].astype(jnp.bfloat16)
    w1 = p["w1"].astype(jnp.bfloat16)
    w2 = p["w2"].astype(jnp.bfloat16)

    # Fold LayerNorm-2 affine into the value head:
    #   (z*g2 + be2) @ wval + bval == z @ (g2^T * wval) + (bval + be2 @ wval)
    wval_f = (p["g2"].reshape(-1, 1) * p["wval"]).reshape(-1)      # (D,)
    bval_f = (p["bval"] + p["be2"] @ p["wval"]).reshape(-1)        # (1,)

    vec_rows = [
        jnp.concatenate([p["bq"].reshape(-1) * scale, p["bk"].reshape(-1),
                         p["bv"].reshape(-1)]),                    # 96
        p["bo"].reshape(-1), p["g1"].reshape(-1), p["be1"].reshape(-1),
        p["bf1"].reshape(-1), p["bf2"].reshape(-1),
        wval_f, bval_f,
    ]
    vecs = jnp.stack([jnp.pad(r.astype(jnp.float32), (0, _VEC_W - r.shape[0]))
                      for r in vec_rows])                          # (8, 96)
    return wqkv, wo, w1, w2, vecs


def _choose_tb(batch, seq):
    """Sequences per grid step."""
    tb_max = max(1, _ROWS_MAX // seq)
    if batch >= 2 * tb_max:
        tb = tb_max                    # large batch: full-size tiles
    elif batch >= 32:
        tb = (batch + 1) // 2          # two steps -> both v7x TensorCores busy
    else:
        tb = batch                     # small batch: one step (v5e/v6e: 1 TC)
    # With >1 grid step the x BlockSpec needs tb*seq to be a multiple of 8.
    if batch > tb:
        while (tb * seq) % 8 != 0:
            tb += 1
    return tb


def critic_forward(x, params):
    B, S, D = x.shape
    assert D == D_MODEL
    tb = _choose_tb(B, S)
    grid = pl.cdiv(B, tb)
    b_pad = grid * tb
    if b_pad != B:
        x = jnp.concatenate(
            [x, jnp.zeros((b_pad - B, S, D), x.dtype)], axis=0)
    rows = tb * S
    x2d = x.reshape(b_pad * S, D)                 # flat rows, 2-D BlockSpec

    wqkv, wo, w1, w2, vecs = _pack_params(params)
    kernel = functools.partial(critic_kernel, tb=tb, seq=S)

    out = pl.pallas_call(
        kernel,
        out_shape=jax.ShapeDtypeStruct((grid, 1, rows), jnp.float32),
        grid=(grid,),
        in_specs=[
            pl.BlockSpec((rows, D), lambda b: (b, 0)),
            pl.BlockSpec(wqkv.shape, lambda b: (0, 0)),
            pl.BlockSpec(wo.shape, lambda b: (0, 0)),
            pl.BlockSpec(w1.shape, lambda b: (0, 0)),
            pl.BlockSpec(w2.shape, lambda b: (0, 0)),
            pl.BlockSpec(vecs.shape, lambda b: (0, 0)),
        ],
        out_specs=pl.BlockSpec((1, 1, rows), lambda b: (b, 0, 0)),
        compiler_params=pltpu.CompilerParams(
            dimension_semantics=("parallel",)),
    )(x2d, wqkv, wo, w1, w2, vecs)

    return out.reshape(b_pad, S, NUM_OUTPUT)[:B]


def critic_reference(x, p):
    """Plain-JAX f32 reference for correctness checking."""
    q = x @ p["wq"] + p["bq"]
    k = x @ p["wk"] + p["bk"]
    v = x @ p["wv"] + p["bv"]
    scale = 1.0 / (HEAD_DIM ** 0.5)
    heads = []
    for h in range(NHEAD):
        sl = slice(h * HEAD_DIM, (h + 1) * HEAD_DIM)
        s = jnp.einsum('bqd,bkd->bqk', q[..., sl], k[..., sl]) * scale
        pa = jax.nn.softmax(s, axis=-1)
        heads.append(jnp.einsum('bqk,bkd->bqd', pa, v[..., sl]))
    attn = jnp.concatenate(heads, axis=-1) @ p["wo"] + p["bo"]

    def ln(z, g, b):
        mu = z.mean(-1, keepdims=True)
        var = ((z - mu) ** 2).mean(-1, keepdims=True)
        return (z - mu) * jax.lax.rsqrt(var + LN_EPS) * g + b

    x1 = ln(x + attn, p["g1"], p["be1"])
    h1 = jnp.maximum(x1 @ p["w1"] + p["bf1"], 0.0)
    h2 = h1 @ p["w2"] + p["bf2"]
    x2 = ln(x1 + h2, p["g2"], p["be2"])
    return x2 @ p["wval"] + p["bval"]


if __name__ == "__main__":
    key = jax.random.PRNGKey(0)
    kx, kp = jax.random.split(key)
    params = init_params(kp)
    S = 8

    # batch=3: single-step small path; 32: two-step path; 256: full 1024-row tiles
    for batch in (3, 32, 256):
        x = jax.random.normal(jax.random.fold_in(kx, batch),
                              (batch, S, D_MODEL), jnp.float32)
        value = critic_forward(x, params)
        jax.block_until_ready(value)
        ref = critic_reference(x, params)
        assert value.shape == (batch, S, NUM_OUTPUT)
        assert bool(jnp.all(jnp.isfinite(value)))
        assert bool(jnp.allclose(value, ref, atol=1e-2, rtol=1e-2)), \
            float(jnp.max(jnp.abs(value - ref)))
    print("KERNEL_OK")
</pallas_src>

<mosaic_0001>
module attributes {stable_mosaic.version = 11 : i64} {
  func.func @critic_kernel(%arg0: i32, %arg1: memref<24x32xf32, #tpu.memory_space<vmem>>, %arg2: memref<32x96xbf16, #tpu.memory_space<vmem>>, %arg3: memref<32x32xbf16, #tpu.memory_space<vmem>>, %arg4: memref<32x64xbf16, #tpu.memory_space<vmem>>, %arg5: memref<64x32xbf16, #tpu.memory_space<vmem>>, %arg6: memref<8x96xf32, #tpu.memory_space<vmem>>, %arg7: memref<1x1x24xf32, #tpu.memory_space<vmem>>) attributes {dimension_semantics = [#tpu.dimension_semantics<parallel>], iteration_bounds = array<i64: 1>, scalar_prefetch = 0 : i64, scratch_operands = 0 : i64, tpu.core_type = #tpu.core_type<tc>, window_params = [{transform_indices = @transform_0, window_bounds = array<i64: 24, 32>}, {pipeline_mode = #tpu.pipeline_mode<synchronous>, transform_indices = @transform_1, window_bounds = array<i64: 32, 96>}, {pipeline_mode = #tpu.pipeline_mode<synchronous>, transform_indices = @transform_2, window_bounds = array<i64: 32, 32>}, {pipeline_mode = #tpu.pipeline_mode<synchronous>, transform_indices = @transform_3, window_bounds = array<i64: 32, 64>}, {pipeline_mode = #tpu.pipeline_mode<synchronous>, transform_indices = @transform_4, window_bounds = array<i64: 64, 32>}, {pipeline_mode = #tpu.pipeline_mode<synchronous>, transform_indices = @transform_5, window_bounds = array<i64: 8, 96>}, {transform_indices = @transform_6, window_bounds = array<i64: 1, 1, 24>}]} {
    %c0 = arith.constant 0 : index
    %c0_0 = arith.constant 0 : index
    %0 = vector.load %arg1[%c0, %c0_0] : memref<24x32xf32, #tpu.memory_space<vmem>>, vector<24x32xf32>
    %c0_1 = arith.constant 0 : index
    %c0_2 = arith.constant 0 : index
    %1 = vector.load %arg6[%c0_1, %c0_2] : memref<8x96xf32, #tpu.memory_space<vmem>>, vector<8x96xf32>
    %2 = vector.extract_strided_slice %1 {offsets = [0, 0], sizes = [1, 96], strides = [1, 1]} : vector<8x96xf32> to vector<1x96xf32>
    %3 = vector.extract_strided_slice %1 {offsets = [1, 0], sizes = [1, 32], strides = [1, 1]} : vector<8x96xf32> to vector<1x32xf32>
    %4 = vector.extract_strided_slice %1 {offsets = [2, 0], sizes = [1, 32], strides = [1, 1]} : vector<8x96xf32> to vector<1x32xf32>
    %5 = vector.extract_strided_slice %1 {offsets = [3, 0], sizes = [1, 32], strides = [1, 1]} : vector<8x96xf32> to vector<1x32xf32>
    %6 = vector.extract_strided_slice %1 {offsets = [4, 0], sizes = [1, 64], strides = [1, 1]} : vector<8x96xf32> to vector<1x64xf32>
    %7 = vector.extract_strided_slice %1 {offsets = [5, 0], sizes = [1, 32], strides = [1, 1]} : vector<8x96xf32> to vector<1x32xf32>
    %8 = vector.extract_strided_slice %1 {offsets = [6, 0], sizes = [1, 32], strides = [1, 1]} : vector<8x96xf32> to vector<1x32xf32>
    %9 = vector.extract_strided_slice %1 {offsets = [7, 0], sizes = [1, 1], strides = [1, 1]} : vector<8x96xf32> to vector<1x1xf32>
    %10 = arith.truncf %0 : vector<24x32xf32> to vector<24x32xbf16>
    %c0_3 = arith.constant 0 : index
    %c0_4 = arith.constant 0 : index
    %11 = vector.load %arg2[%c0_3, %c0_4] : memref<32x96xbf16, #tpu.memory_space<vmem>>, vector<32x96xbf16>
    %cst = arith.constant dense<0.000000e+00> : vector<24x96xf32>
    %12 = tpu.matmul %10, %11, %cst {dimension_numbers = #tpu.dot_dimension_numbers<[1], [0], [0], [1], [0, 0, 1, 1], [], []>} : vector<24x32xbf16>, vector<32x96xbf16>, vector<24x96xf32> -> vector<24x96xf32>
    %13 = vector.broadcast %2 : vector<1x96xf32> to vector<24x96xf32>
    %14 = arith.addf %12, %13 : vector<24x96xf32>
    %15 = vector.extract_strided_slice %14 {offsets = [0, 0], sizes = [24, 32], strides = [1, 1]} : vector<24x96xf32> to vector<24x32xf32>
    %16 = vector.shape_cast %15 : vector<24x32xf32> to vector<3x8x32xf32>
    %17 = vector.extract_strided_slice %14 {offsets = [0, 32], sizes = [24, 32], strides = [1, 1]} : vector<24x96xf32> to vector<24x32xf32>
    %18 = vector.shape_cast %17 : vector<24x32xf32> to vector<3x8x32xf32>
    %19 = vector.extract_strided_slice %14 {offsets = [0, 64], sizes = [24, 32], strides = [1, 1]} : vector<24x96xf32> to vector<24x32xf32>
    %20 = vector.shape_cast %19 : vector<24x32xf32> to vector<3x8x32xf32>
    %21 = vector.extract_strided_slice %16 {offsets = [0, 0, 0], sizes = [3, 8, 8], strides = [1, 1, 1]} : vector<3x8x32xf32> to vector<3x8x8xf32>
    %22 = vector.extract_strided_slice %16 {offsets = [0, 0, 8], sizes = [3, 8, 8], strides = [1, 1, 1]} : vector<3x8x32xf32> to vector<3x8x8xf32>
    %23 = vector.extract_strided_slice %16 {offsets = [0, 0, 16], sizes = [3, 8, 8], strides = [1, 1, 1]} : vector<3x8x32xf32> to vector<3x8x8xf32>
    %24 = vector.extract_strided_slice %16 {offsets = [0, 0, 24], sizes = [3, 8, 8], strides = [1, 1, 1]} : vector<3x8x32xf32> to vector<3x8x8xf32>
    %25 = tpu.concatenate %21, %22, %23, %24 in 0 : vector<3x8x8xf32>, vector<3x8x8xf32>, vector<3x8x8xf32>, vector<3x8x8xf32> -> vector<12x8x8xf32>
    %26 = arith.truncf %25 : vector<12x8x8xf32> to vector<12x8x8xbf16>
    %27 = vector.extract_strided_slice %18 {offsets = [0, 0, 0], sizes = [3, 8, 8], strides = [1, 1, 1]} : vector<3x8x32xf32> to vector<3x8x8xf32>
    %28 = vector.extract_strided_slice %18 {offsets = [0, 0, 8], sizes = [3, 8, 8], strides = [1, 1, 1]} : vector<3x8x32xf32> to vector<3x8x8xf32>
    %29 = vector.extract_strided_slice %18 {offsets = [0, 0, 16], sizes = [3, 8, 8], strides = [1, 1, 1]} : vector<3x8x32xf32> to vector<3x8x8xf32>
    %30 = vector.extract_strided_slice %18 {offsets = [0, 0, 24], sizes = [3, 8, 8], strides = [1, 1, 1]} : vector<3x8x32xf32> to vector<3x8x8xf32>
    %31 = tpu.concatenate %27, %28, %29, %30 in 0 : vector<3x8x8xf32>, vector<3x8x8xf32>, vector<3x8x8xf32>, vector<3x8x8xf32> -> vector<12x8x8xf32>
    %32 = arith.truncf %31 : vector<12x8x8xf32> to vector<12x8x8xbf16>
    %33 = vector.extract_strided_slice %20 {offsets = [0, 0, 0], sizes = [3, 8, 8], strides = [1, 1, 1]} : vector<3x8x32xf32> to vector<3x8x8xf32>
    %34 = vector.extract_strided_slice %20 {offsets = [0, 0, 8], sizes = [3, 8, 8], strides = [1, 1, 1]} : vector<3x8x32xf32> to vector<3x8x8xf32>
    %35 = vector.extract_strided_slice %20 {offsets = [0, 0, 16], sizes = [3, 8, 8], strides = [1, 1, 1]} : vector<3x8x32xf32> to vector<3x8x8xf32>
    %36 = vector.extract_strided_slice %20 {offsets = [0, 0, 24], sizes = [3, 8, 8], strides = [1, 1, 1]} : vector<3x8x32xf32> to vector<3x8x8xf32>
    %37 = tpu.concatenate %33, %34, %35, %36 in 0 : vector<3x8x8xf32>, vector<3x8x8xf32>, vector<3x8x8xf32>, vector<3x8x8xf32> -> vector<12x8x8xf32>
    %38 = arith.truncf %37 : vector<12x8x8xf32> to vector<12x8x8xbf16>
    "tpu.trace_start"() <{level = 10 : i32, message = "bqd,bkd->bqk"}> : () -> ()
    %cst_5 = arith.constant dense<0.000000e+00> : vector<12x8x8xf32>
    %39 = tpu.matmul %26, %32, %cst_5 {dimension_numbers = #tpu.dot_dimension_numbers<[2], [2], [1], [1], [0, 0, 0, 1, 1, 1], [0], [0]>} : vector<12x8x8xbf16>, vector<12x8x8xbf16>, vector<12x8x8xf32> -> vector<12x8x8xf32>
    "tpu.trace_stop"() : () -> ()
    %cst_6 = arith.constant dense<0xFF800000> : vector<12x8xf32>
    %40 = vector.multi_reduction <maximumf>, %39, %cst_6 [2] : vector<12x8x8xf32> to vector<12x8xf32>
    %41 = vector.shape_cast %40 : vector<12x8xf32> to vector<12x8x1xf32>
    %42 = vector.broadcast %41 : vector<12x8x1xf32> to vector<12x8x8xf32>
    %43 = arith.subf %39, %42 : vector<12x8x8xf32>
    %44 = math.exp %43 : vector<12x8x8xf32>
    %cst_7 = arith.constant dense<0.000000e+00> : vector<12x8xf32>
    %45 = vector.multi_reduction <add>, %44, %cst_7 [2] : vector<12x8x8xf32> to vector<12x8xf32>
    %46 = vector.shape_cast %45 : vector<12x8xf32> to vector<12x8x1xf32>
    %47 = tpu.reciprocal %46 {approx = true} : vector<12x8x1xf32> -> vector<12x8x1xf32>
    %48 = vector.broadcast %47 : vector<12x8x1xf32> to vector<12x8x8xf32>
    %49 = arith.mulf %44, %48 : vector<12x8x8xf32>
    %50 = arith.truncf %49 : vector<12x8x8xf32> to vector<12x8x8xbf16>
    "tpu.trace_start"() <{level = 10 : i32, message = "bqk,bkd->bqd"}> : () -> ()
    %cst_8 = arith.constant dense<0.000000e+00> : vector<12x8x8xf32>
    %51 = tpu.matmul %50, %38, %cst_8 {dimension_numbers = #tpu.dot_dimension_numbers<[2], [1], [1], [2], [0, 0, 0, 1, 1, 2], [0], [0]>} : vector<12x8x8xbf16>, vector<12x8x8xbf16>, vector<12x8x8xf32> -> vector<12x8x8xf32>
    "tpu.trace_stop"() : () -> ()
    %52 = vector.extract_strided_slice %51 {offsets = [0, 0, 0], sizes = [3, 8, 8], strides = [1, 1, 1]} : vector<12x8x8xf32> to vector<3x8x8xf32>
    %53 = vector.extract_strided_slice %51 {offsets = [3, 0, 0], sizes = [3, 8, 8], strides = [1, 1, 1]} : vector<12x8x8xf32> to vector<3x8x8xf32>
    %54 = vector.extract_strided_slice %51 {offsets = [6, 0, 0], sizes = [3, 8, 8], strides = [1, 1, 1]} : vector<12x8x8xf32> to vector<3x8x8xf32>
    %55 = vector.extract_strided_slice %51 {offsets = [9, 0, 0], sizes = [3, 8, 8], strides = [1, 1, 1]} : vector<12x8x8xf32> to vector<3x8x8xf32>
    %56 = tpu.concatenate %52, %53, %54, %55 in 2 : vector<3x8x8xf32>, vector<3x8x8xf32>, vector<3x8x8xf32>, vector<3x8x8xf32> -> vector<3x8x32xf32>
    %57 = vector.shape_cast %56 : vector<3x8x32xf32> to vector<24x32xf32>
    %58 = arith.truncf %57 : vector<24x32xf32> to vector<24x32xbf16>
    %c0_9 = arith.constant 0 : index
    %c0_10 = arith.constant 0 : index
    %59 = vector.load %arg3[%c0_9, %c0_10] : memref<32x32xbf16, #tpu.memory_space<vmem>>, vector<32x32xbf16>
    %cst_11 = arith.constant dense<0.000000e+00> : vector<24x32xf32>
    %60 = tpu.matmul %58, %59, %cst_11 {dimension_numbers = #tpu.dot_dimension_numbers<[1], [0], [0], [1], [0, 0, 1, 1], [], []>} : vector<24x32xbf16>, vector<32x32xbf16>, vector<24x32xf32> -> vector<24x32xf32>
    %61 = vector.broadcast %3 : vector<1x32xf32> to vector<24x32xf32>
    %62 = arith.addf %60, %61 : vector<24x32xf32>
    %63 = arith.addf %0, %62 : vector<24x32xf32>
    %cst_12 = arith.constant dense<0.000000e+00> : vector<24xf32>
    %64 = vector.multi_reduction <add>, %63, %cst_12 [1] : vector<24x32xf32> to vector<24xf32>
    %65 = vector.shape_cast %64 : vector<24xf32> to vector<24x1xf32>
    %cst_13 = arith.constant 3.200000e+01 : f32
    %66 = vector.broadcast %cst_13 : f32 to vector<24x1xf32>
    %67 = arith.divf %65, %66 : vector<24x1xf32>
    %68 = vector.broadcast %67 : vector<24x1xf32> to vector<24x32xf32>
    %69 = arith.subf %63, %68 : vector<24x32xf32>
    %70 = arith.mulf %69, %69 : vector<24x32xf32>
    %cst_14 = arith.constant dense<0.000000e+00> : vector<24xf32>
    %71 = vector.multi_reduction <add>, %70, %cst_14 [1] : vector<24x32xf32> to vector<24xf32>
    %72 = vector.shape_cast %71 : vector<24xf32> to vector<24x1xf32>
    %cst_15 = arith.constant 3.200000e+01 : f32
    %73 = vector.broadcast %cst_15 : f32 to vector<24x1xf32>
    %74 = arith.divf %72, %73 : vector<24x1xf32>
    %75 = vector.broadcast %67 : vector<24x1xf32> to vector<24x32xf32>
    %76 = arith.subf %63, %75 : vector<24x32xf32>
    %cst_16 = arith.constant 9.99999974E-6 : f32
    %77 = vector.broadcast %cst_16 : f32 to vector<24x1xf32>
    %78 = arith.addf %74, %77 : vector<24x1xf32>
    %79 = math.rsqrt %78 : vector<24x1xf32>
    %80 = vector.broadcast %79 : vector<24x1xf32> to vector<24x32xf32>
    %81 = arith.mulf %76, %80 : vector<24x32xf32>
    %82 = vector.broadcast %4 : vector<1x32xf32> to vector<24x32xf32>
    %83 = arith.mulf %81, %82 : vector<24x32xf32>
    %84 = vector.broadcast %5 : vector<1x32xf32> to vector<24x32xf32>
    %85 = arith.addf %83, %84 : vector<24x32xf32>
    %86 = arith.truncf %85 : vector<24x32xf32> to vector<24x32xbf16>
    %c0_17 = arith.constant 0 : index
    %c0_18 = arith.constant 0 : index
    %87 = vector.load %arg4[%c0_17, %c0_18] : memref<32x64xbf16, #tpu.memory_space<vmem>>, vector<32x64xbf16>
    %cst_19 = arith.constant dense<0.000000e+00> : vector<24x64xf32>
    %88 = tpu.matmul %86, %87, %cst_19 {dimension_numbers = #tpu.dot_dimension_numbers<[1], [0], [0], [1], [0, 0, 1, 1], [], []>} : vector<24x32xbf16>, vector<32x64xbf16>, vector<24x64xf32> -> vector<24x64xf32>
    %89 = vector.broadcast %6 : vector<1x64xf32> to vector<24x64xf32>
    %90 = arith.addf %88, %89 : vector<24x64xf32>
    %cst_20 = arith.constant 0.000000e+00 : f32
    %91 = vector.broadcast %cst_20 : f32 to vector<24x64xf32>
    %92 = arith.maximumf %90, %91 : vector<24x64xf32>
    %93 = arith.truncf %92 : vector<24x64xf32> to vector<24x64xbf16>
    %c0_21 = arith.constant 0 : index
    %c0_22 = arith.constant 0 : index
    %94 = vector.load %arg5[%c0_21, %c0_22] : memref<64x32xbf16, #tpu.memory_space<vmem>>, vector<64x32xbf16>
    %cst_23 = arith.constant dense<0.000000e+00> : vector<24x32xf32>
    %95 = tpu.matmul %93, %94, %cst_23 {dimension_numbers = #tpu.dot_dimension_numbers<[1], [0], [0], [1], [0, 0, 1, 1], [], []>} : vector<24x64xbf16>, vector<64x32xbf16>, vector<24x32xf32> -> vector<24x32xf32>
    %96 = vector.broadcast %7 : vector<1x32xf32> to vector<24x32xf32>
    %97 = arith.addf %95, %96 : vector<24x32xf32>
    %98 = arith.addf %85, %97 : vector<24x32xf32>
    %cst_24 = arith.constant dense<0.000000e+00> : vector<24xf32>
    %99 = vector.multi_reduction <add>, %98, %cst_24 [1] : vector<24x32xf32> to vector<24xf32>
    %100 = vector.shape_cast %99 : vector<24xf32> to vector<24x1xf32>
    %cst_25 = arith.constant 3.200000e+01 : f32
    %101 = vector.broadcast %cst_25 : f32 to vector<24x1xf32>
    %102 = arith.divf %100, %101 : vector<24x1xf32>
    %103 = vector.broadcast %102 : vector<24x1xf32> to vector<24x32xf32>
    %104 = arith.subf %98, %103 : vector<24x32xf32>
    %105 = arith.mulf %104, %104 : vector<24x32xf32>
    %cst_26 = arith.constant dense<0.000000e+00> : vector<24xf32>
    %106 = vector.multi_reduction <add>, %105, %cst_26 [1] : vector<24x32xf32> to vector<24xf32>
    %107 = vector.shape_cast %106 : vector<24xf32> to vector<24x1xf32>
    %cst_27 = arith.constant 3.200000e+01 : f32
    %108 = vector.broadcast %cst_27 : f32 to vector<24x1xf32>
    %109 = arith.divf %107, %108 : vector<24x1xf32>
    %110 = vector.broadcast %102 : vector<24x1xf32> to vector<24x32xf32>
    %111 = arith.subf %98, %110 : vector<24x32xf32>
    %cst_28 = arith.constant 9.99999974E-6 : f32
    %112 = vector.broadcast %cst_28 : f32 to vector<24x1xf32>
    %113 = arith.addf %109, %112 : vector<24x1xf32>
    %114 = math.rsqrt %113 : vector<24x1xf32>
    %115 = vector.broadcast %114 : vector<24x1xf32> to vector<24x32xf32>
    %116 = arith.mulf %111, %115 : vector<24x32xf32>
    %117 = vector.broadcast %8 : vector<1x32xf32> to vector<24x32xf32>
    %118 = arith.mulf %116, %117 : vector<24x32xf32>
    %cst_29 = arith.constant dense<0.000000e+00> : vector<24xf32>
    %119 = vector.multi_reduction <add>, %118, %cst_29 [1] : vector<24x32xf32> to vector<24xf32>
    %120 = vector.shape_cast %119 : vector<24xf32> to vector<24x1xf32>
    %121 = vector.broadcast %9 : vector<1x1xf32> to vector<24x1xf32>
    %122 = arith.addf %120, %121 : vector<24x1xf32>
    %123 = tpu.transpose %122, [1, 0] : vector<24x1xf32> -> vector<1x24xf32>
    %124 = vector.shape_cast %123 : vector<1x24xf32> to vector<1x1x24xf32>
    %c0_30 = arith.constant 0 : index
    %c0_31 = arith.constant 0 : index
    %c0_32 = arith.constant 0 : index
    %125 = vector.load %arg7[%c0_30, %c0_31, %c0_32] : memref<1x1x24xf32, #tpu.memory_space<vmem>>, vector<1x1x24xf32>
    tpu.vector_store %arg7[%c0_30, %c0_31, %c0_32], %124 {strides = array<i32>} : memref<1x1x24xf32, #tpu.memory_space<vmem>>, vector<1x1x24xf32>,
    return
  }
  func.func @transform_0(%arg0: i32) -> (i32, i32) {
    %c0_i32 = arith.constant 0 : i32
    %c0_i32_0 = arith.constant 0 : i32
    return %arg0, %c0_i32 : i32, i32
  }
  func.func @transform_1(%arg0: i32) -> (i32, i32) {
    %c0_i32 = arith.constant 0 : i32
    %c0_i32_0 = arith.constant 0 : i32
    %c0_i32_1 = arith.constant 0 : i32
    return %c0_i32, %c0_i32_0 : i32, i32
  }
  func.func @transform_2(%arg0: i32) -> (i32, i32) {
    %c0_i32 = arith.constant 0 : i32
    %c0_i32_0 = arith.constant 0 : i32
    %c0_i32_1 = arith.constant 0 : i32
    return %c0_i32, %c0_i32_0 : i32, i32
  }
  func.func @transform_3(%arg0: i32) -> (i32, i32) {
    %c0_i32 = arith.constant 0 : i32
    %c0_i32_0 = arith.constant 0 : i32
    %c0_i32_1 = arith.constant 0 : i32
    return %c0_i32, %c0_i32_0 : i32, i32
  }
  func.func @transform_4(%arg0: i32) -> (i32, i32) {
    %c0_i32 = arith.constant 0 : i32
    %c0_i32_0 = arith.constant 0 : i32
    %c0_i32_1 = arith.constant 0 : i32
    return %c0_i32, %c0_i32_0 : i32, i32
  }
  func.func @transform_5(%arg0: i32) -> (i32, i32) {
    %c0_i32 = arith.constant 0 : i32
    %c0_i32_0 = arith.constant 0 : i32
    %c0_i32_1 = arith.constant 0 : i32
    return %c0_i32, %c0_i32_0 : i32, i32
  }
  func.func @transform_6(%arg0: i32) -> (i32, i32, i32) {
    %c0_i32 = arith.constant 0 : i32
    %c0_i32_0 = arith.constant 0 : i32
    %c0_i32_1 = arith.constant 0 : i32
    return %arg0, %c0_i32, %c0_i32_0 : i32, i32, i32
  }
}

</mosaic_0001>

<llo_original>
// kernel: tpu_custom_call.1
$region0: #{tpu_custom_call.1}
  #allocation0 [shape = 'u32[]', space=smem, size = 0x4, offset = 0x4, fixed_abs, tag = 'smem constant byte address 0x4 - core index']
  #allocation1 [shape = 'u32[144,128]{1,0:T(1,128)}', space=vmem, size = 0x12000, scoped, tag = 'internal scratch']
  %s0 = inlined_call_operand.vmem [shape: f32[24,32], index: 0, kind: input, shape index: {}]
  %s1 = inlined_call_operand.vmem [shape: bf16[32,96], index: 1, kind: input, shape index: {}]
  %s2 = inlined_call_operand.hbm [shape: bf16[32,32], index: 2, kind: input, shape index: {}]
  %s3 = inlined_call_operand.hbm [shape: bf16[32,64], index: 3, kind: input, shape index: {}]
  %s4 = inlined_call_operand.vmem [shape: bf16[64,32], index: 4, kind: input, shape index: {}]
  %s5 = inlined_call_operand.vmem [shape: f32[8,96], index: 5, kind: input, shape index: {}]
  %s6 = inlined_call_operand.hbm [shape: f32[1,1,24], index: 6, kind: output, shape index: {}]
  %s7 = sld [smem:[#allocation0]]
  $region42: #{tpu_custom_call.1} parent=0
    _
  %s9 = ssub.s32 1, %s7
  %s10 = scalar_select 0, %s9, %s7
  $region1: #{tpu_custom_call.1} parent=0
    #allocation2 [shape = 'u8[8192]{0}', space=vmem, size = 0x2000, scoped, tag = 'input window, operand 2, single buffered']
    #allocation3 [shape = 's32[1]{0}', space=sflag, size = 0x4, scoped, tag = 'scoped memory for tpu_custom_call.1']
    #allocation4 [shape = 's32[1]{0}', space=sflag, size = 0x4, scoped, tag = 'scoped memory for tpu_custom_call.1']
    #allocation5 [shape = 'u8[8192]{0}', space=vmem, size = 0x2000, scoped, tag = 'input window, operand 3, single buffered']
    #allocation6 [shape = 's32[1]{0}', space=sflag, size = 0x4, scoped, tag = 'scoped memory for tpu_custom_call.1']
    #allocation7 [shape = 'u8[512]{0}', space=vmem, size = 0x400, scoped, tag = 'output window, operand 0, single buffered']
    %11 = vsyncpa [#allocation3], 0
    %12 = vsyncpa [#allocation6], 0
    %13 = vsyncpa [#allocation4], 0
    // Predicated region
    $region2: #{tpu_custom_call.1} parent=1 // pred_check
      _
    $region3: #{tpu_custom_call.1} parent=1 // pred_check_branch
      %15 = sbr.rel (0) target = $region5
    $region4: #{tpu_custom_call.1} parent=1 // pred_region
      _
    $region5: #{tpu_custom_call.1} parent=1 // pred_fallthru
      _
    // Predicated region
    $region6: #{tpu_custom_call.1} parent=1 // pred_check
      _
    $region7: #{tpu_custom_call.1} parent=1 // pred_check_branch
      %17 = sbr.rel (0) target = $region9
    $region8: #{tpu_custom_call.1} parent=1 // pred_region
      _
    $region9: #{tpu_custom_call.1} parent=1 // pred_fallthru
      _
    // Predicated region
    $region10: #{tpu_custom_call.1} parent=1 // pred_check
      _
    $region11: #{tpu_custom_call.1} parent=1 // pred_check_branch
      %19 = sbr.rel (0) target = $region13
    $region12: #{tpu_custom_call.1} parent=1 // pred_region
      %s21 = ssub.s32 256, 256
      %22 = vsyncadd [#allocation3], %s21
      %s23 = sshll.u32 [#allocation2], 4
      %s24 = int_to_ptr.vmem [resolvable:$true] %s23
      %29 = dma.hbm_to_vmem [thread:$0]  %s2, 256, %s24, [#allocation3], 64, 64, 4
    $region13: #{tpu_custom_call.1} parent=1 // pred_fallthru
      _
    // Predicated region
    $region14: #{tpu_custom_call.1} parent=1 // pred_check
      _
    $region15: #{tpu_custom_call.1} parent=1 // pred_check_branch
      %31 = sbr.rel (0) target = $region17
    $region16: #{tpu_custom_call.1} parent=1 // pred_region
      %s33 = ssub.s32 256, 256
      %34 = vsyncadd [#allocation6], %s33
      %s35 = sshll.u32 [#allocation5], 4
      %s36 = int_to_ptr.vmem [resolvable:$true] %s35
      %41 = dma.hbm_to_vmem [thread:$0]  %s3, 256, %s36, [#allocation6], 64, 64, 4
    $region17: #{tpu_custom_call.1} parent=1 // pred_fallthru
      _
    // Predicated region
    $region18: #{tpu_custom_call.1} parent=1 // pred_check
      _
    $region19: #{tpu_custom_call.1} parent=1 // pred_check_branch
      %43 = sbr.rel (0) target = $region21
    $region20: #{tpu_custom_call.1} parent=1 // pred_region
      _
    $region21: #{tpu_custom_call.1} parent=1 // pred_fallthru
      _
    // Predicated region
    $region22: #{tpu_custom_call.1} parent=1 // pred_check
      _
    $region23: #{tpu_custom_call.1} parent=1 // pred_check_branch
      %45 = sbr.rel (0) target = $region25
    $region24: #{tpu_custom_call.1} parent=1 // pred_region
      _
    $region25: #{tpu_custom_call.1} parent=1 // pred_fallthru
      _
    // Predicated region
    $region26: #{tpu_custom_call.1} parent=1 // pred_check
      _
    $region27: #{tpu_custom_call.1} parent=1 // pred_check_branch
      %47 = sbr.rel (0) target = $region29
    $region28: #{tpu_custom_call.1} parent=1 // pred_region
      %48 = dma.done [#allocation3], 256
    $region29: #{tpu_custom_call.1} parent=1 // pred_fallthru
      _
    // Predicated region
    $region30: #{tpu_custom_call.1} parent=1 // pred_check
      _
    $region31: #{tpu_custom_call.1} parent=1 // pred_check_branch
      %50 = sbr.rel (0) target = $region33
    $region32: #{tpu_custom_call.1} parent=1 // pred_region
      %51 = dma.done [#allocation6], 256
    $region33: #{tpu_custom_call.1} parent=1 // pred_fallthru
      _
    %v53 = vld [vmem:[%s0] sm:$0xff]
    %v54 = vld [vmem:[%s0 + $0x8] sm:$0xff]
    %v55 = vld [vmem:[%s0 + $0x10] sm:$0xff]
    %v56 = vld [vmem:[%s5] sm:$0xff]
    %v57 = vpack.c.bf16 %v54, %v53
    %v58 = vpack.c.bf16 %v55, %v55
    %v59 = vld [vmem:[%s1] sm:$0xf]
    %v60 = vld [vmem:[%s1 + $0x4] sm:$0xf]
    %v61 = vld [vmem:[%s1 + $0x8] sm:$0xf]
    %v62 = vld [vmem:[%s1 + $0xc] sm:$0xf]
    %v63 = vlaneseq
    %v64 = vshrl.u32 %v63, 7
    %v65 = vsub.s32 0, %v64
    %v66 = vrot.slane %v56, %v65
    %v71 = vunpack.c.l.b16 %v59
    %v72 = vunpack.c.l.b16 %v60
    %v73 = vunpack.c.l.b16 %v61
    %v74 = vunpack.c.l.b16 %v62
    %v75 = vpack.c.b16 %v72, %v71
    %v76 = vpack.c.b16 %v74, %v73
    %vm79 = vcmask 261120
    %v81 = vsel %vm79, %v57, 0
    %v84 = vsel %vm79, %v58, 0
    %86 = vmatprep.subr.bf16.mxu0 0
    %87 = vmatpush1.bf16.msra.mxu0 0
    %88 = vmatprep.subr.bf16.mxu0 0
    %89 = vmatpush1.bf16.msra.mxu0 0
    %90 = vmatprep.subr.bf16.mxu0 0
    %91 = vmatpush1.bf16.msra.mxu0 0
    %92 = vmatprep.subr.bf16.mxu0 0
    %93 = vmatpush1.bf16.msra.mxu0 0
    %94 = vmatprep.subr.bf16.mxu0 0
    %95 = vmatpush1.bf16.msra.mxu0 0
    %96 = vmatprep.subr.bf16.mxu0 0
    %97 = vmatpush1.bf16.msra.mxu0 0
    %98 = vmatprep.subr.bf16.mxu0 0
    %99 = vmatpush1.bf16.msra.mxu0 %v76
    %100 = vmatprep.subr.bf16.mxu0 0
    %101 = vmatpush1.bf16.msra.mxu0 %v75
    %102 = vmatprep.subr.bf16.mxu0 0
    %103 = vmatpush2.bf16.msra.mxu0 0
    %104 = vmatprep.subr.bf16.mxu0 0
    %105 = vmatpush2.bf16.msra.mxu0 0
    %106 = vmatprep.subr.bf16.mxu0 0
    %107 = vmatpush2.bf16.msra.mxu0 0
    %108 = vmatprep.subr.bf16.mxu0 0
    %109 = vmatpush2.bf16.msra.mxu0 0
    %110 = vmatprep.subr.bf16.mxu0 0
    %111 = vmatpush2.bf16.msra.mxu0 0
    %112 = vmatprep.subr.bf16.mxu0 0
    %113 = vmatpush2.bf16.msra.mxu0 0
    %114 = vmatprep.subr.bf16.mxu0 0
    %115 = vmatpush2.bf16.msra.mxu0 0
    %116 = vmatprep.subr.bf16.mxu0 0
    %117 = vmatpush2.bf16.msra.mxu0 0
    %118 = vmatprep.mubr.bf16.mxu0 0
    %119 = vmatmul.mubr.bf16.gmra.mxu0 %v81
    %v120 = vpop.f32.mrf.mxu0
    %v121 = vadd.f32 %v66, %v120
    %v122 = vpop.f32.mrf.mxu0
    %v123 = vpop.f32.mrf.mxu0
    %v124 = vadd.f32 %v66, %v123
    %v125 = vpop.f32.mrf.mxu0
    %126 = vmatprep.mubr.bf16.mxu0 0
    %127 = vmatmul.mubr.bf16.gmra.mxu0 %v84
    %v128 = vpop.f32.mrf.mxu0
    %v129 = vadd.f32 %v66, %v128
    %v130 = vpop.f32.mrf.mxu0
    %v131 = vpop.f32.mrf.mxu0
    %v132 = vpop.f32.mrf.mxu0
    %133 = vdwg.mxu0
    %137 = vrot.lane.b32.xlu0 %v121, 120
    %v138 = vpop.permute.xlu0 %137
    %139 = vrot.lane.b32.xlu0 %v124, 120
    %v140 = vpop.permute.xlu0 %139
    %141 = vrot.lane.b32.xlu0 %v129, 120
    %v142 = vpop.permute.xlu0 %141
    %146 = vrot.lane.b32.xlu0 %v121, 112
    %v147 = vpop.permute.xlu0 %146
    %148 = vrot.lane.b32.xlu0 %v124, 112
    %v149 = vpop.permute.xlu0 %148
    %150 = vrot.lane.b32.xlu0 %v129, 112
    %v151 = vpop.permute.xlu0 %150
    %155 = vrot.lane.b32.xlu0 %v121, 104
    %v156 = vpop.permute.xlu0 %155
    %157 = vrot.lane.b32.xlu0 %v124, 104
    %v158 = vpop.permute.xlu0 %157
    %159 = vrot.lane.b32.xlu0 %v129, 104
    %v160 = vpop.permute.xlu0 %159
    %v164 = vpack.c.bf16 %v121, %v121
    %v165 = vpack.c.bf16 %v124, %v124
    %v166 = vpack.c.bf16 %v129, %v129
    %v167 = vpack.c.bf16 %v138, %v138
    %v168 = vpack.c.bf16 %v140, %v140
    %v169 = vpack.c.bf16 %v142, %v142
    %v170 = vpack.c.bf16 %v147, %v147
    %v171 = vpack.c.bf16 %v149, %v149
    %v172 = vpack.c.bf16 %v151, %v151
    %v173 = vpack.c.bf16 %v156, %v156
    %v174 = vpack.c.bf16 %v158, %v158
    %v175 = vpack.c.bf16 %v160, %v160
    %177 = vrot.lane.b32.xlu0 %v164, 96
    %v178 = vpop.permute.xlu0 %177
    %vm179 = vcmask 64512
    %v181 = vsel %vm179, %v164, 0
    %v184 = vsel %vm179, %v178, 0
    %186 = vmatprep.subr.bf16.mxu0 0
    %187 = vmatpush1.bf16.xpose.msra.mxu0 0
    %188 = vmatprep.subr.bf16.mxu0 0
    %189 = vmatpush1.bf16.xpose.msra.mxu0 0
    %190 = vmatprep.subr.bf16.mxu0 0
    %191 = vmatpush1.bf16.xpose.msra.mxu0 0
    %192 = vmatprep.subr.bf16.mxu0 0
    %193 = vmatpush1.bf16.xpose.msra.mxu0 0
    %194 = vmatprep.subr.bf16.mxu0 0
    %195 = vmatpush1.bf16.xpose.msra.mxu0 0
    %196 = vmatprep.subr.bf16.mxu0 0
    %197 = vmatpush1.bf16.xpose.msra.mxu0 0
    %198 = vmatprep.subr.bf16.mxu0 0
    %199 = vmatpush1.bf16.xpose.msra.mxu0 0
    %200 = vmatprep.subr.bf16.mxu0 0
    %201 = vmatpush1.bf16.xpose.msra.mxu0 %v184
    %202 = vmatprep.subr.bf16.mxu0 0
    %203 = vmatpush2.bf16.xpose.msra.mxu0 0
    %204 = vmatprep.subr.bf16.mxu0 0
    %205 = vmatpush2.bf16.xpose.msra.mxu0 0
    %206 = vmatprep.subr.bf16.mxu0 0
    %207 = vmatpush2.bf16.xpose.msra.mxu0 0
    %208 = vmatprep.subr.bf16.mxu0 0
    %209 = vmatpush2.bf16.xpose.msra.mxu0 0
    %210 = vmatprep.subr.bf16.mxu0 0
    %211 = vmatpush2.bf16.xpose.msra.mxu0 0
    %212 = vmatprep.subr.bf16.mxu0 0
    %213 = vmatpush2.bf16.xpose.msra.mxu0 0
    %214 = vmatprep.subr.bf16.mxu0 0
    %215 = vmatpush2.bf16.xpose.msra.mxu0 0
    %216 = vmatprep.subr.bf16.mxu0 0
    %217 = vmatpush2.bf16.xpose.msra.mxu0 0
    %218 = vmatprep.mubr.bf16.mxu0 0
    %219 = vmatmul.mubr.bf16.gmra.mxu0 %v181
    %v220 = vpop.f32.mrf.mxu0
    %v221 = vadd.f32 0.0, %v220
    %v222 = vpop.f32.mrf.mxu0
    %v223 = vpop.f32.mrf.mxu0
    %v224 = vpop.f32.mrf.mxu0
    %225 = vdwg.mxu0
    %227 = vrot.lane.b32.xlu0 %v165, 96
    %v228 = vpop.permute.xlu0 %227
    %v230 = vsel %vm179, %v165, 0
    %v233 = vsel %vm179, %v228, 0
    %235 = vmatprep.subr.bf16.mxu0 0
    %236 = vmatpush1.bf16.xpose.msra.mxu0 0
    %237 = vmatprep.subr.bf16.mxu0 0
    %238 = vmatpush1.bf16.xpose.msra.mxu0 0
    %239 = vmatprep.subr.bf16.mxu0 0
    %240 = vmatpush1.bf16.xpose.msra.mxu0 0
    %241 = vmatprep.subr.bf16.mxu0 0
    %242 = vmatpush1.bf16.xpose.msra.mxu0 0
    %243 = vmatprep.subr.bf16.mxu0 0
    %244 = vmatpush1.bf16.xpose.msra.mxu0 0
    %245 = vmatprep.subr.bf16.mxu0 0
    %246 = vmatpush1.bf16.xpose.msra.mxu0 0
    %247 = vmatprep.subr.bf16.mxu0 0
    %248 = vmatpush1.bf16.xpose.msra.mxu0 0
    %249 = vmatprep.subr.bf16.mxu0 0
    %250 = vmatpush1.bf16.xpose.msra.mxu0 %v233
    %251 = vmatprep.subr.bf16.mxu0 0
    %252 = vmatpush2.bf16.xpose.msra.mxu0 0
    %253 = vmatprep.subr.bf16.mxu0 0
    %254 = vmatpush2.bf16.xpose.msra.mxu0 0
    %255 = vmatprep.subr.bf16.mxu0 0
    %256 = vmatpush2.bf16.xpose.msra.mxu0 0
    %257 = vmatprep.subr.bf16.mxu0 0
    %258 = vmatpush2.bf16.xpose.msra.mxu0 0
    %259 = vmatprep.subr.bf16.mxu0 0
    %260 = vmatpush2.bf16.xpose.msra.mxu0 0
    %261 = vmatprep.subr.bf16.mxu0 0
    %262 = vmatpush2.bf16.xpose.msra.mxu0 0
    %263 = vmatprep.subr.bf16.mxu0 0
    %264 = vmatpush2.bf16.xpose.msra.mxu0 0
    %265 = vmatprep.subr.bf16.mxu0 0
    %266 = vmatpush2.bf16.xpose.msra.mxu0 0
    %267 = vmatprep.mubr.bf16.mxu0 0
    %268 = vmatmul.mubr.bf16.gmra.mxu0 %v230
    %v269 = vpop.f32.mrf.mxu0
    %v270 = vadd.f32 0.0, %v269
    %v271 = vpop.f32.mrf.mxu0
    %v272 = vpop.f32.mrf.mxu0
    %v273 = vpop.f32.mrf.mxu0
    %274 = vdwg.mxu0
    %276 = vrot.lane.b32.xlu0 %v166, 96
    %v277 = vpop.permute.xlu0 %276
    %v279 = vsel %vm179, %v166, 0
    %v282 = vsel %vm179, %v277, 0
    %284 = vmatprep.subr.bf16.mxu0 0
    %285 = vmatpush1.bf16.xpose.msra.mxu0 0
    %286 = vmatprep.subr.bf16.mxu0 0
    %287 = vmatpush1.bf16.xpose.msra.mxu0 0
    %288 = vmatprep.subr.bf16.mxu0 0
    %289 = vmatpush1.bf16.xpose.msra.mxu0 0
    %290 = vmatprep.subr.bf16.mxu0 0
    %291 = vmatpush1.bf16.xpose.msra.mxu0 0
    %292 = vmatprep.subr.bf16.mxu0 0
    %293 = vmatpush1.bf16.xpose.msra.mxu0 0
    %294 = vmatprep.subr.bf16.mxu0 0
    %295 = vmatpush1.bf16.xpose.msra.mxu0 0
    %296 = vmatprep.subr.bf16.mxu0 0
    %297 = vmatpush1.bf16.xpose.msra.mxu0 0
    %298 = vmatprep.subr.bf16.mxu0 0
    %299 = vmatpush1.bf16.xpose.msra.mxu0 %v282
    %300 = vmatprep.subr.bf16.mxu0 0
    %301 = vmatpush2.bf16.xpose.msra.mxu0 0
    %302 = vmatprep.subr.bf16.mxu0 0
    %303 = vmatpush2.bf16.xpose.msra.mxu0 0
    %304 = vmatprep.subr.bf16.mxu0 0
    %305 = vmatpush2.bf16.xpose.msra.mxu0 0
    %306 = vmatprep.subr.bf16.mxu0 0
    %307 = vmatpush2.bf16.xpose.msra.mxu0 0
    %308 = vmatprep.subr.bf16.mxu0 0
    %309 = vmatpush2.bf16.xpose.msra.mxu0 0
    %310 = vmatprep.subr.bf16.mxu0 0
    %311 = vmatpush2.bf16.xpose.msra.mxu0 0
    %312 = vmatprep.subr.bf16.mxu0 0
    %313 = vmatpush2.bf16.xpose.msra.mxu0 0
    %314 = vmatprep.subr.bf16.mxu0 0
    %315 = vmatpush2.bf16.xpose.msra.mxu0 0
    %316 = vmatprep.mubr.bf16.mxu0 0
    %317 = vmatmul.mubr.bf16.gmra.mxu0 %v279
    %v318 = vpop.f32.mrf.mxu0
    %v319 = vadd.f32 0.0, %v318
    %v320 = vpop.f32.mrf.mxu0
    %v321 = vpop.f32.mrf.mxu0
    %v322 = vpop.f32.mrf.mxu0
    %323 = vdwg.mxu0
    %325 = vrot.lane.b32.xlu0 %v167, 96
    %v326 = vpop.permute.xlu0 %325
    %v328 = vsel %vm179, %v167, 0
    %v331 = vsel %vm179, %v326, 0
    %333 = vmatprep.subr.bf16.mxu0 0
    %334 = vmatpush1.bf16.xpose.msra.mxu0 0
    %335 = vmatprep.subr.bf16.mxu0 0
    %336 = vmatpush1.bf16.xpose.msra.mxu0 0
    %337 = vmatprep.subr.bf16.mxu0 0
    %338 = vmatpush1.bf16.xpose.msra.mxu0 0
    %339 = vmatprep.subr.bf16.mxu0 0
    %340 = vmatpush1.bf16.xpose.msra.mxu0 0
    %341 = vmatprep.subr.bf16.mxu0 0
    %342 = vmatpush1.bf16.xpose.msra.mxu0 0
    %343 = vmatprep.subr.bf16.mxu0 0
    %344 = vmatpush1.bf16.xpose.msra.mxu0 0
    %345 = vmatprep.subr.bf16.mxu0 0
    %346 = vmatpush1.bf16.xpose.msra.mxu0 0
    %347 = vmatprep.subr.bf16.mxu0 0
    %348 = vmatpush1.bf16.xpose.msra.mxu0 %v331
    %349 = vmatprep.subr.bf16.mxu0 0
    %350 = vmatpush2.bf16.xpose.msra.mxu0 0
    %351 = vmatprep.subr.bf16.mxu0 0
    %352 = vmatpush2.bf16.xpose.msra.mxu0 0
    %353 = vmatprep.subr.bf16.mxu0 0
    %354 = vmatpush2.bf16.xpose.msra.mxu0 0
    %355 = vmatprep.subr.bf16.mxu0 0
    %356 = vmatpush2.bf16.xpose.msra.mxu0 0
    %357 = vmatprep.subr.bf16.mxu0 0
    %358 = vmatpush2.bf16.xpose.msra.mxu0 0
    %359 = vmatprep.subr.bf16.mxu0 0
    %360 = vmatpush2.bf16.xpose.msra.mxu0 0
    %361 = vmatprep.subr.bf16.mxu0 0
    %362 = vmatpush2.bf16.xpose.msra.mxu0 0
    %363 = vmatprep.subr.bf16.mxu0 0
    %364 = vmatpush2.bf16.xpose.msra.mxu0 0
    %365 = vmatprep.mubr.bf16.mxu0 0
    %366 = vmatmul.mubr.bf16.gmra.mxu0 %v328
    %v367 = vpop.f32.mrf.mxu0
    %v368 = vadd.f32 0.0, %v367
    %v369 = vpop.f32.mrf.mxu0
    %v370 = vpop.f32.mrf.mxu0
    %v371 = vpop.f32.mrf.mxu0
    %372 = vdwg.mxu0
    %374 = vrot.lane.b32.xlu0 %v168, 96
    %v375 = vpop.permute.xlu0 %374
    %v377 = vsel %vm179, %v168, 0
    %v380 = vsel %vm179, %v375, 0
    %382 = vmatprep.subr.bf16.mxu0 0
    %383 = vmatpush1.bf16.xpose.msra.mxu0 0
    %384 = vmatprep.subr.bf16.mxu0 0
    %385 = vmatpush1.bf16.xpose.msra.mxu0 0
    %386 = vmatprep.subr.bf16.mxu0 0
    %387 = vmatpush1.bf16.xpose.msra.mxu0 0
    %388 = vmatprep.subr.bf16.mxu0 0
    %389 = vmatpush1.bf16.xpose.msra.mxu0 0
    %390 = vmatprep.subr.bf16.mxu0 0
    %391 = vmatpush1.bf16.xpose.msra.mxu0 0
    %392 = vmatprep.subr.bf16.mxu0 0
    %393 = vmatpush1.bf16.xpose.msra.mxu0 0
    %394 = vmatprep.subr.bf16.mxu0 0
    %395 = vmatpush1.bf16.xpose.msra.mxu0 0
    %396 = vmatprep.subr.bf16.mxu0 0
    %397 = vmatpush1.bf16.xpose.msra.mxu0 %v380
    %398 = vmatprep.subr.bf16.mxu0 0
    %399 = vmatpush2.bf16.xpose.msra.mxu0 0
    %400 = vmatprep.subr.bf16.mxu0 0
    %401 = vmatpush2.bf16.xpose.msra.mxu0 0
    %402 = vmatprep.subr.bf16.mxu0 0
    %403 = vmatpush2.bf16.xpose.msra.mxu0 0
    %404 = vmatprep.subr.bf16.mxu0 0
    %405 = vmatpush2.bf16.xpose.msra.mxu0 0
    %406 = vmatprep.subr.bf16.mxu0 0
    %407 = vmatpush2.bf16.xpose.msra.mxu0 0
    %408 = vmatprep.subr.bf16.mxu0 0
    %409 = vmatpush2.bf16.xpose.msra.mxu0 0
    %410 = vmatprep.subr.bf16.mxu0 0
    %411 = vmatpush2.bf16.xpose.msra.mxu0 0
    %412 = vmatprep.subr.bf16.mxu0 0
    %413 = vmatpush2.bf16.xpose.msra.mxu0 0
    %414 = vmatprep.mubr.bf16.mxu0 0
    %415 = vmatmul.mubr.bf16.gmra.mxu0 %v377
    %v416 = vpop.f32.mrf.mxu0
    %v417 = vadd.f32 0.0, %v416
    %v418 = vpop.f32.mrf.mxu0
    %v419 = vpop.f32.mrf.mxu0
    %v420 = vpop.f32.mrf.mxu0
    %421 = vdwg.mxu0
    %423 = vrot.lane.b32.xlu0 %v169, 96
    %v424 = vpop.permute.xlu0 %423
    %v426 = vsel %vm179, %v169, 0
    %v429 = vsel %vm179, %v424, 0
    %431 = vmatprep.subr.bf16.mxu0 0
    %432 = vmatpush1.bf16.xpose.msra.mxu0 0
    %433 = vmatprep.subr.bf16.mxu0 0
    %434 = vmatpush1.bf16.xpose.msra.mxu0 0
    %435 = vmatprep.subr.bf16.mxu0 0
    %436 = vmatpush1.bf16.xpose.msra.mxu0 0
    %437 = vmatprep.subr.bf16.mxu0 0
    %438 = vmatpush1.bf16.xpose.msra.mxu0 0
    %439 = vmatprep.subr.bf16.mxu0 0
    %440 = vmatpush1.bf16.xpose.msra.mxu0 0
    %441 = vmatprep.subr.bf16.mxu0 0
    %442 = vmatpush1.bf16.xpose.msra.mxu0 0
    %443 = vmatprep.subr.bf16.mxu0 0
    %444 = vmatpush1.bf16.xpose.msra.mxu0 0
    %445 = vmatprep.subr.bf16.mxu0 0
    %446 = vmatpush1.bf16.xpose.msra.mxu0 %v429
    %447 = vmatprep.subr.bf16.mxu0 0
    %448 = vmatpush2.bf16.xpose.msra.mxu0 0
    %449 = vmatprep.subr.bf16.mxu0 0
    %450 = vmatpush2.bf16.xpose.msra.mxu0 0
    %451 = vmatprep.subr.bf16.mxu0 0
    %452 = vmatpush2.bf16.xpose.msra.mxu0 0
    %453 = vmatprep.subr.bf16.mxu0 0
    %454 = vmatpush2.bf16.xpose.msra.mxu0 0
    %455 = vmatprep.subr.bf16.mxu0 0
    %456 = vmatpush2.bf16.xpose.msra.mxu0 0
    %457 = vmatprep.subr.bf16.mxu0 0
    %458 = vmatpush2.bf16.xpose.msra.mxu0 0
    %459 = vmatprep.subr.bf16.mxu0 0
    %460 = vmatpush2.bf16.xpose.msra.mxu0 0
    %461 = vmatprep.subr.bf16.mxu0 0
    %462 = vmatpush2.bf16.xpose.msra.mxu0 0
    %463 = vmatprep.mubr.bf16.mxu0 0
    %464 = vmatmul.mubr.bf16.gmra.mxu0 %v426
    %v465 = vpop.f32.mrf.mxu0
    %v466 = vadd.f32 0.0, %v465
    %v467 = vpop.f32.mrf.mxu0
    %v468 = vpop.f32.mrf.mxu0
    %v469 = vpop.f32.mrf.mxu0
    %470 = vdwg.mxu0
    %472 = vrot.lane.b32.xlu0 %v170, 96
    %v473 = vpop.permute.xlu0 %472
    %v475 = vsel %vm179, %v170, 0
    %v478 = vsel %vm179, %v473, 0
    %480 = vmatprep.subr.bf16.mxu0 0
    %481 = vmatpush1.bf16.xpose.msra.mxu0 0
    %482 = vmatprep.subr.bf16.mxu0 0
    %483 = vmatpush1.bf16.xpose.msra.mxu0 0
    %484 = vmatprep.subr.bf16.mxu0 0
    %485 = vmatpush1.bf16.xpose.msra.mxu0 0
    %486 = vmatprep.subr.bf16.mxu0 0
    %487 = vmatpush1.bf16.xpose.msra.mxu0 0
    %488 = vmatprep.subr.bf16.mxu0 0
    %489 = vmatpush1.bf16.xpose.msra.mxu0 0
    %490 = vmatprep.subr.bf16.mxu0 0
    %491 = vmatpush1.bf16.xpose.msra.mxu0 0
    %492 = vmatprep.subr.bf16.mxu0 0
    %493 = vmatpush1.bf16.xpose.msra.mxu0 0
    %494 = vmatprep.subr.bf16.mxu0 0
    %495 = vmatpush1.bf16.xpose.msra.mxu0 %v478
    %496 = vmatprep.subr.bf16.mxu0 0
    %497 = vmatpush2.bf16.xpose.msra.mxu0 0
    %498 = vmatprep.subr.bf16.mxu0 0
    %499 = vmatpush2.bf16.xpose.msra.mxu0 0
    %500 = vmatprep.subr.bf16.mxu0 0
    %501 = vmatpush2.bf16.xpose.msra.mxu0 0
    %502 = vmatprep.subr.bf16.mxu0 0
    %503 = vmatpush2.bf16.xpose.msra.mxu0 0
    %504 = vmatprep.subr.bf16.mxu0 0
    %505 = vmatpush2.bf16.xpose.msra.mxu0 0
    %506 = vmatprep.subr.bf16.mxu0 0
    %507 = vmatpush2.bf16.xpose.msra.mxu0 0
    %508 = vmatprep.subr.bf16.mxu0 0
    %509 = vmatpush2.bf16.xpose.msra.mxu0 0
    %510 = vmatprep.subr.bf16.mxu0 0
    %511 = vmatpush2.bf16.xpose.msra.mxu0 0
    %512 = vmatprep.mubr.bf16.mxu0 0
    %513 = vmatmul.mubr.bf16.gmra.mxu0 %v475
    %v514 = vpop.f32.mrf.mxu0
    %v515 = vadd.f32 0.0, %v514
    %v516 = vpop.f32.mrf.mxu0
    %v517 = vpop.f32.mrf.mxu0
    %v518 = vpop.f32.mrf.mxu0
    %519 = vdwg.mxu0
    %521 = vrot.lane.b32.xlu0 %v171, 96
    %v522 = vpop.permute.xlu0 %521
    %v524 = vsel %vm179, %v171, 0
    %v527 = vsel %vm179, %v522, 0
    %529 = vmatprep.subr.bf16.mxu0 0
    %530 = vmatpush1.bf16.xpose.msra.mxu0 0
    %531 = vmatprep.subr.bf16.mxu0 0
    %532 = vmatpush1.bf16.xpose.msra.mxu0 0
    %533 = vmatprep.subr.bf16.mxu0 0
    %534 = vmatpush1.bf16.xpose.msra.mxu0 0
    %535 = vmatprep.subr.bf16.mxu0 0
    %536 = vmatpush1.bf16.xpose.msra.mxu0 0
    %537 = vmatprep.subr.bf16.mxu0 0
    %538 = vmatpush1.bf16.xpose.msra.mxu0 0
    %539 = vmatprep.subr.bf16.mxu0 0
    %540 = vmatpush1.bf16.xpose.msra.mxu0 0
    %541 = vmatprep.subr.bf16.mxu0 0
    %542 = vmatpush1.bf16.xpose.msra.mxu0 0
    %543 = vmatprep.subr.bf16.mxu0 0
    %544 = vmatpush1.bf16.xpose.msra.mxu0 %v527
    %545 = vmatprep.subr.bf16.mxu0 0
    %546 = vmatpush2.bf16.xpose.msra.mxu0 0
    %547 = vmatprep.subr.bf16.mxu0 0
    %548 = vmatpush2.bf16.xpose.msra.mxu0 0
    %549 = vmatprep.subr.bf16.mxu0 0
    %550 = vmatpush2.bf16.xpose.msra.mxu0 0
    %551 = vmatprep.subr.bf16.mxu0 0
    %552 = vmatpush2.bf16.xpose.msra.mxu0 0
    %553 = vmatprep.subr.bf16.mxu0 0
    %554 = vmatpush2.bf16.xpose.msra.mxu0 0
    %555 = vmatprep.subr.bf16.mxu0 0
    %556 = vmatpush2.bf16.xpose.msra.mxu0 0
    %557 = vmatprep.subr.bf16.mxu0 0
    %558 = vmatpush2.bf16.xpose.msra.mxu0 0
    %559 = vmatprep.subr.bf16.mxu0 0
    %560 = vmatpush2.bf16.xpose.msra.mxu0 0
    %561 = vmatprep.mubr.bf16.mxu0 0
    %562 = vmatmul.mubr.bf16.gmra.mxu0 %v524
    %v563 = vpop.f32.mrf.mxu0
    %v564 = vadd.f32 0.0, %v563
    %v565 = vpop.f32.mrf.mxu0
    %v566 = vpop.f32.mrf.mxu0
    %v567 = vpop.f32.mrf.mxu0
    %568 = vdwg.mxu0
    %570 = vrot.lane.b32.xlu0 %v172, 96
    %v571 = vpop.permute.xlu0 %570
    %v573 = vsel %vm179, %v172, 0
    %v576 = vsel %vm179, %v571, 0
    %578 = vmatprep.subr.bf16.mxu0 0
    %579 = vmatpush1.bf16.xpose.msra.mxu0 0
    %580 = vmatprep.subr.bf16.mxu0 0
    %581 = vmatpush1.bf16.xpose.msra.mxu0 0
    %582 = vmatprep.subr.bf16.mxu0 0
    %583 = vmatpush1.bf16.xpose.msra.mxu0 0
    %584 = vmatprep.subr.bf16.mxu0 0
    %585 = vmatpush1.bf16.xpose.msra.mxu0 0
    %586 = vmatprep.subr.bf16.mxu0 0
    %587 = vmatpush1.bf16.xpose.msra.mxu0 0
    %588 = vmatprep.subr.bf16.mxu0 0
    %589 = vmatpush1.bf16.xpose.msra.mxu0 0
    %590 = vmatprep.subr.bf16.mxu0 0
    %591 = vmatpush1.bf16.xpose.msra.mxu0 0
    %592 = vmatprep.subr.bf16.mxu0 0
    %593 = vmatpush1.bf16.xpose.msra.mxu0 %v576
    %594 = vmatprep.subr.bf16.mxu0 0
    %595 = vmatpush2.bf16.xpose.msra.mxu0 0
    %596 = vmatprep.subr.bf16.mxu0 0
    %597 = vmatpush2.bf16.xpose.msra.mxu0 0
    %598 = vmatprep.subr.bf16.mxu0 0
    %599 = vmatpush2.bf16.xpose.msra.mxu0 0
    %600 = vmatprep.subr.bf16.mxu0 0
    %601 = vmatpush2.bf16.xpose.msra.mxu0 0
    %602 = vmatprep.subr.bf16.mxu0 0
    %603 = vmatpush2.bf16.xpose.msra.mxu0 0
    %604 = vmatprep.subr.bf16.mxu0 0
    %605 = vmatpush2.bf16.xpose.msra.mxu0 0
    %606 = vmatprep.subr.bf16.mxu0 0
    %607 = vmatpush2.bf16.xpose.msra.mxu0 0
    %608 = vmatprep.subr.bf16.mxu0 0
    %609 = vmatpush2.bf16.xpose.msra.mxu0 0
    %610 = vmatprep.mubr.bf16.mxu0 0
    %611 = vmatmul.mubr.bf16.gmra.mxu0 %v573
    %v612 = vpop.f32.mrf.mxu0
    %v613 = vadd.f32 0.0, %v612
    %v614 = vpop.f32.mrf.mxu0
    %v615 = vpop.f32.mrf.mxu0
    %v616 = vpop.f32.mrf.mxu0
    %617 = vdwg.mxu0
    %619 = vrot.lane.b32.xlu0 %v173, 96
    %v620 = vpop.permute.xlu0 %619
    %v622 = vsel %vm179, %v173, 0
    %v625 = vsel %vm179, %v620, 0
    %627 = vmatprep.subr.bf16.mxu0 0
    %628 = vmatpush1.bf16.xpose.msra.mxu0 0
    %629 = vmatprep.subr.bf16.mxu0 0
    %630 = vmatpush1.bf16.xpose.msra.mxu0 0
    %631 = vmatprep.subr.bf16.mxu0 0
    %632 = vmatpush1.bf16.xpose.msra.mxu0 0
    %633 = vmatprep.subr.bf16.mxu0 0
    %634 = vmatpush1.bf16.xpose.msra.mxu0 0
    %635 = vmatprep.subr.bf16.mxu0 0
    %636 = vmatpush1.bf16.xpose.msra.mxu0 0
    %637 = vmatprep.subr.bf16.mxu0 0
    %638 = vmatpush1.bf16.xpose.msra.mxu0 0
    %639 = vmatprep.subr.bf16.mxu0 0
    %640 = vmatpush1.bf16.xpose.msra.mxu0 0
    %641 = vmatprep.subr.bf16.mxu0 0
    %642 = vmatpush1.bf16.xpose.msra.mxu0 %v625
    %643 = vmatprep.subr.bf16.mxu0 0
    %644 = vmatpush2.bf16.xpose.msra.mxu0 0
    %645 = vmatprep.subr.bf16.mxu0 0
    %646 = vmatpush2.bf16.xpose.msra.mxu0 0
    %647 = vmatprep.subr.bf16.mxu0 0
    %648 = vmatpush2.bf16.xpose.msra.mxu0 0
    %649 = vmatprep.subr.bf16.mxu0 0
    %650 = vmatpush2.bf16.xpose.msra.mxu0 0
    %651 = vmatprep.subr.bf16.mxu0 0
    %652 = vmatpush2.bf16.xpose.msra.mxu0 0
    %653 = vmatprep.subr.bf16.mxu0 0
    %654 = vmatpush2.bf16.xpose.msra.mxu0 0
    %655 = vmatprep.subr.bf16.mxu0 0
    %656 = vmatpush2.bf16.xpose.msra.mxu0 0
    %657 = vmatprep.subr.bf16.mxu0 0
    %658 = vmatpush2.bf16.xpose.msra.mxu0 0
    %659 = vmatprep.mubr.bf16.mxu0 0
    %660 = vmatmul.mubr.bf16.gmra.mxu0 %v622
    %v661 = vpop.f32.mrf.mxu0
    %v662 = vadd.f32 0.0, %v661
    %v663 = vpop.f32.mrf.mxu0
    %v664 = vpop.f32.mrf.mxu0
    %v665 = vpop.f32.mrf.mxu0
    %666 = vdwg.mxu0
    %668 = vrot.lane.b32.xlu0 %v174, 96
    %v669 = vpop.permute.xlu0 %668
    %v671 = vsel %vm179, %v174, 0
    %v674 = vsel %vm179, %v669, 0
    %676 = vmatprep.subr.bf16.mxu0 0
    %677 = vmatpush1.bf16.xpose.msra.mxu0 0
    %678 = vmatprep.subr.bf16.mxu0 0
    %679 = vmatpush1.bf16.xpose.msra.mxu0 0
    %680 = vmatprep.subr.bf16.mxu0 0
    %681 = vmatpush1.bf16.xpose.msra.mxu0 0
    %682 = vmatprep.subr.bf16.mxu0 0
    %683 = vmatpush1.bf16.xpose.msra.mxu0 0
    %684 = vmatprep.subr.bf16.mxu0 0
    %685 = vmatpush1.bf16.xpose.msra.mxu0 0
    %686 = vmatprep.subr.bf16.mxu0 0
    %687 = vmatpush1.bf16.xpose.msra.mxu0 0
    %688 = vmatprep.subr.bf16.mxu0 0
    %689 = vmatpush1.bf16.xpose.msra.mxu0 0
    %690 = vmatprep.subr.bf16.mxu0 0
    %691 = vmatpush1.bf16.xpose.msra.mxu0 %v674
    %692 = vmatprep.subr.bf16.mxu0 0
    %693 = vmatpush2.bf16.xpose.msra.mxu0 0
    %694 = vmatprep.subr.bf16.mxu0 0
    %695 = vmatpush2.bf16.xpose.msra.mxu0 0
    %696 = vmatprep.subr.bf16.mxu0 0
    %697 = vmatpush2.bf16.xpose.msra.mxu0 0
    %698 = vmatprep.subr.bf16.mxu0 0
    %699 = vmatpush2.bf16.xpose.msra.mxu0 0
    %700 = vmatprep.subr.bf16.mxu0 0
    %701 = vmatpush2.bf16.xpose.msra.mxu0 0
    %702 = vmatprep.subr.bf16.mxu0 0
    %703 = vmatpush2.bf16.xpose.msra.mxu0 0
    %704 = vmatprep.subr.bf16.mxu0 0
    %705 = vmatpush2.bf16.xpose.msra.mxu0 0
    %706 = vmatprep.subr.bf16.mxu0 0
    %707 = vmatpush2.bf16.xpose.msra.mxu0 0
    %708 = vmatprep.mubr.bf16.mxu0 0
    %709 = vmatmul.mubr.bf16.gmra.mxu0 %v671
    %v710 = vpop.f32.mrf.mxu0
    %v711 = vadd.f32 0.0, %v710
    %v712 = vpop.f32.mrf.mxu0
    %v713 = vpop.f32.mrf.mxu0
    %v714 = vpop.f32.mrf.mxu0
    %715 = vdwg.mxu0
    %717 = vrot.lane.b32.xlu0 %v175, 96
    %v718 = vpop.permute.xlu0 %717
    %v720 = vsel %vm179, %v175, 0
    %v723 = vsel %vm179, %v718, 0
    %725 = vmatprep.subr.bf16.mxu0 0
    %726 = vmatpush1.bf16.xpose.msra.mxu0 0
    %727 = vmatprep.subr.bf16.mxu0 0
    %728 = vmatpush1.bf16.xpose.msra.mxu0 0
    %729 = vmatprep.subr.bf16.mxu0 0
    %730 = vmatpush1.bf16.xpose.msra.mxu0 0
    %731 = vmatprep.subr.bf16.mxu0 0
    %732 = vmatpush1.bf16.xpose.msra.mxu0 0
    %733 = vmatprep.subr.bf16.mxu0 0
    %734 = vmatpush1.bf16.xpose.msra.mxu0 0
    %735 = vmatprep.subr.bf16.mxu0 0
    %736 = vmatpush1.bf16.xpose.msra.mxu0 0
    %737 = vmatprep.subr.bf16.mxu0 0
    %738 = vmatpush1.bf16.xpose.msra.mxu0 0
    %739 = vmatprep.subr.bf16.mxu0 0
    %740 = vmatpush1.bf16.xpose.msra.mxu0 %v723
    %741 = vmatprep.subr.bf16.mxu0 0
    %742 = vmatpush2.bf16.xpose.msra.mxu0 0
    %743 = vmatprep.subr.bf16.mxu0 0
    %744 = vmatpush2.bf16.xpose.msra.mxu0 0
    %745 = vmatprep.subr.bf16.mxu0 0
    %746 = vmatpush2.bf16.xpose.msra.mxu0 0
    %747 = vmatprep.subr.bf16.mxu0 0
    %748 = vmatpush2.bf16.xpose.msra.mxu0 0
    %749 = vmatprep.subr.bf16.mxu0 0
    %750 = vmatpush2.bf16.xpose.msra.mxu0 0
    %751 = vmatprep.subr.bf16.mxu0 0
    %752 = vmatpush2.bf16.xpose.msra.mxu0 0
    %753 = vmatprep.subr.bf16.mxu0 0
    %754 = vmatpush2.bf16.xpose.msra.mxu0 0
    %755 = vmatprep.subr.bf16.mxu0 0
    %756 = vmatpush2.bf16.xpose.msra.mxu0 0
    %757 = vmatprep.mubr.bf16.mxu0 0
    %758 = vmatmul.mubr.bf16.gmra.mxu0 %v720
    %v759 = vpop.f32.mrf.mxu0
    %v760 = vadd.f32 0.0, %v759
    %v761 = vpop.f32.mrf.mxu0
    %v762 = vpop.f32.mrf.mxu0
    %v763 = vpop.f32.mrf.mxu0
    %764 = vdwg.mxu0
    %v765 = vsel %vm179, %v221, -inf
    %766 = vmax.xlane.f32.xlu0 %v765
    %v767 = vpop.xlane.xlu0 %766
    %v768 = vsel %vm179, %v270, -inf
    %769 = vmax.xlane.f32.xlu0 %v768
    %v770 = vpop.xlane.xlu0 %769
    %v771 = vsel %vm179, %v319, -inf
    %772 = vmax.xlane.f32.xlu0 %v771
    %v773 = vpop.xlane.xlu0 %772
    %v774 = vsel %vm179, %v368, -inf
    %775 = vmax.xlane.f32.xlu0 %v774
    %v776 = vpop.xlane.xlu0 %775
    %v777 = vsel %vm179, %v417, -inf
    %778 = vmax.xlane.f32.xlu0 %v777
    %v779 = vpop.xlane.xlu0 %778
    %v780 = vsel %vm179, %v466, -inf
    %781 = vmax.xlane.f32.xlu0 %v780
    %v782 = vpop.xlane.xlu0 %781
    %v783 = vsel %vm179, %v515, -inf
    %784 = vmax.xlane.f32.xlu0 %v783
    %v785 = vpop.xlane.xlu0 %784
    %v786 = vsel %vm179, %v564, -inf
    %787 = vmax.xlane.f32.xlu0 %v786
    %v788 = vpop.xlane.xlu0 %787
    %v789 = vsel %vm179, %v613, -inf
    %790 = vmax.xlane.f32.xlu0 %v789
    %v791 = vpop.xlane.xlu0 %790
    %v792 = vsel %vm179, %v662, -inf
    %793 = vmax.xlane.f32.xlu0 %v792
    %v794 = vpop.xlane.xlu0 %793
    %v795 = vsel %vm179, %v711, -inf
    %796 = vmax.xlane.f32.xlu0 %v795
    %v797 = vpop.xlane.xlu0 %796
    %v798 = vsel %vm179, %v760, -inf
    %799 = vmax.xlane.f32.xlu0 %v798
    %v800 = vpop.xlane.xlu0 %799
    %v801 = vsub.f32 %v221, %v767
    %v802 = vsub.f32 %v270, %v770
    %v803 = vsub.f32 %v319, %v773
    %v804 = vsub.f32 %v368, %v776
    %v805 = vsub.f32 %v417, %v779
    %v806 = vsub.f32 %v466, %v782
    %v807 = vsub.f32 %v515, %v785
    %v808 = vsub.f32 %v564, %v788
    %v809 = vsub.f32 %v613, %v791
    %v810 = vsub.f32 %v662, %v794
    %v811 = vsub.f32 %v711, %v797
    %v812 = vsub.f32 %v760, %v800
    %v813 = vmul.f32 %v801, 1.442695
    %v814 = vpow.pop %v813
    %v815 = vmul.f32 %v802, 1.442695
    %v816 = vpow.pop %v815
    %v817 = vmul.f32 %v803, 1.442695
    %v818 = vpow.pop %v817
    %v819 = vmul.f32 %v804, 1.442695
    %v820 = vpow.pop %v819
    %v821 = vmul.f32 %v805, 1.442695
    %v822 = vpow.pop %v821
    %v823 = vmul.f32 %v806, 1.442695
    %v824 = vpow.pop %v823
    %v825 = vmul.f32 %v807, 1.442695
    %v826 = vpow.pop %v825
    %v827 = vmul.f32 %v808, 1.442695
    %v828 = vpow.pop %v827
    %v829 = vmul.f32 %v809, 1.442695
    %v830 = vpow.pop %v829
    %v831 = vmul.f32 %v810, 1.442695
    %v832 = vpow.pop %v831
    %v833 = vmul.f32 %v811, 1.442695
    %v834 = vpow.pop %v833
    %v835 = vmul.f32 %v812, 1.442695
    %v836 = vpow.pop %v835
    %v837 = vsel %vm179, %v814, 0.0
    %838 = vadd.xlane.f32.xlu0 %v837
    %v839 = vpop.xlane.xlu0 %838
    %v840 = vsel %vm179, %v816, 0.0
    %841 = vadd.xlane.f32.xlu0 %v840
    %v842 = vpop.xlane.xlu0 %841
    %v843 = vsel %vm179, %v818, 0.0
    %844 = vadd.xlane.f32.xlu0 %v843
    %v845 = vpop.xlane.xlu0 %844
    %v846 = vsel %vm179, %v820, 0.0
    %847 = vadd.xlane.f32.xlu0 %v846
    %v848 = vpop.xlane.xlu0 %847
    %v849 = vsel %vm179, %v822, 0.0
    %850 = vadd.xlane.f32.xlu0 %v849
    %v851 = vpop.xlane.xlu0 %850
    %v852 = vsel %vm179, %v824, 0.0
    %853 = vadd.xlane.f32.xlu0 %v852
    %v854 = vpop.xlane.xlu0 %853
    %v855 = vsel %vm179, %v826, 0.0
    %856 = vadd.xlane.f32.xlu0 %v855
    %v857 = vpop.xlane.xlu0 %856
    %v858 = vsel %vm179, %v828, 0.0
    %859 = vadd.xlane.f32.xlu0 %v858
    %v860 = vpop.xlane.xlu0 %859
    %v861 = vsel %vm179, %v830, 0.0
    %862 = vadd.xlane.f32.xlu0 %v861
    %v863 = vpop.xlane.xlu0 %862
    %v864 = vsel %vm179, %v832, 0.0
    %865 = vadd.xlane.f32.xlu0 %v864
    %v866 = vpop.xlane.xlu0 %865
    %v867 = vsel %vm179, %v834, 0.0
    %868 = vadd.xlane.f32.xlu0 %v867
    %v869 = vpop.xlane.xlu0 %868
    %v870 = vsel %vm179, %v836, 0.0
    %871 = vadd.xlane.f32.xlu0 %v870
    %v872 = vpop.xlane.xlu0 %871
    %v873 = vrcp.pop %v839
    %v874 = vrcp.pop %v842
    %v875 = vrcp.pop %v845
    %v876 = vrcp.pop %v848
    %v877 = vrcp.pop %v851
    %v878 = vrcp.pop %v854
    %v879 = vrcp.pop %v857
    %v880 = vrcp.pop %v860
    %v881 = vrcp.pop %v863
    %v882 = vrcp.pop %v866
    %v883 = vrcp.pop %v869
    %v884 = vrcp.pop %v872
    %v885 = vmul.f32 %v814, %v873
    %v886 = vmul.f32 %v816, %v874
    %v887 = vmul.f32 %v818, %v875
    %v888 = vmul.f32 %v820, %v876
    %v889 = vmul.f32 %v822, %v877
    %v890 = vmul.f32 %v824, %v878
    %v891 = vmul.f32 %v826, %v879
    %v892 = vmul.f32 %v828, %v880
    %v893 = vmul.f32 %v830, %v881
    %v894 = vmul.f32 %v832, %v882
    %v895 = vmul.f32 %v834, %v883
    %v896 = vmul.f32 %v836, %v884
    %v897 = vpack.c.bf16 %v885, %v885
    %v898 = vpack.c.bf16 %v886, %v886
    %v899 = vpack.c.bf16 %v887, %v887
    %v900 = vpack.c.bf16 %v888, %v888
    %v901 = vpack.c.bf16 %v889, %v889
    %v902 = vpack.c.bf16 %v890, %v890
    %v903 = vpack.c.bf16 %v891, %v891
    %v904 = vpack.c.bf16 %v892, %v892
    %v905 = vpack.c.bf16 %v893, %v893
    %v906 = vpack.c.bf16 %v894, %v894
    %v907 = vpack.c.bf16 %v895, %v895
    %v908 = vpack.c.bf16 %v896, %v896
    %909 = vrot.lane.b32.xlu0 %v164, 64
    %v910 = vpop.permute.xlu0 %909
    %v912 = vsel %vm179, %v897, 0
    %vm914 = vcmask 1043456
    %v916 = vsel %vm914, %v910, 0
    %918 = vmatprep.subr.bf16.mxu0 0
    %919 = vmatpush1.bf16.msra.mxu0 0
    %920 = vmatprep.subr.bf16.mxu0 0
    %921 = vmatpush1.bf16.msra.mxu0 0
    %922 = vmatprep.subr.bf16.mxu0 0
    %923 = vmatpush1.bf16.msra.mxu0 0
    %924 = vmatprep.subr.bf16.mxu0 0
    %925 = vmatpush1.bf16.msra.mxu0 0
    %926 = vmatprep.subr.bf16.mxu0 0
    %927 = vmatpush1.bf16.msra.mxu0 0
    %928 = vmatprep.subr.bf16.mxu0 0
    %929 = vmatpush1.bf16.msra.mxu0 0
    %930 = vmatprep.subr.bf16.mxu0 0
    %931 = vmatpush1.bf16.msra.mxu0 0
    %932 = vmatprep.subr.bf16.mxu0 0
    %933 = vmatpush1.bf16.msra.mxu0 %v916
    %934 = vmatprep.subr.bf16.mxu0 0
    %935 = vmatpush2.bf16.msra.mxu0 0
    %936 = vmatprep.subr.bf16.mxu0 0
    %937 = vmatpush2.bf16.msra.mxu0 0
    %938 = vmatprep.subr.bf16.mxu0 0
    %939 = vmatpush2.bf16.msra.mxu0 0
    %940 = vmatprep.subr.bf16.mxu0 0
    %941 = vmatpush2.bf16.msra.mxu0 0
    %942 = vmatprep.subr.bf16.mxu0 0
    %943 = vmatpush2.bf16.msra.mxu0 0
    %944 = vmatprep.subr.bf16.mxu0 0
    %945 = vmatpush2.bf16.msra.mxu0 0
    %946 = vmatprep.subr.bf16.mxu0 0
    %947 = vmatpush2.bf16.msra.mxu0 0
    %948 = vmatprep.subr.bf16.mxu0 0
    %949 = vmatpush2.bf16.msra.mxu0 0
    %950 = vmatprep.mubr.bf16.mxu0 0
    %951 = vmatmul.mubr.bf16.gmra.mxu0 %v912
    %v952 = vpop.f32.mrf.mxu0
    %v953 = vadd.f32 0.0, %v952
    %v954 = vpop.f32.mrf.mxu0
    %v955 = vpop.f32.mrf.mxu0
    %v956 = vpop.f32.mrf.mxu0
    %957 = vdwg.mxu0
    %958 = vrot.lane.b32.xlu0 %v165, 64
    %v959 = vpop.permute.xlu0 %958
    %v961 = vsel %vm179, %v898, 0
    %v964 = vsel %vm914, %v959, 0
    %966 = vmatprep.subr.bf16.mxu0 0
    %967 = vmatpush1.bf16.msra.mxu0 0
    %968 = vmatprep.subr.bf16.mxu0 0
    %969 = vmatpush1.bf16.msra.mxu0 0
    %970 = vmatprep.subr.bf16.mxu0 0
    %971 = vmatpush1.bf16.msra.mxu0 0
    %972 = vmatprep.subr.bf16.mxu0 0
    %973 = vmatpush1.bf16.msra.mxu0 0
    %974 = vmatprep.subr.bf16.mxu0 0
    %975 = vmatpush1.bf16.msra.mxu0 0
    %976 = vmatprep.subr.bf16.mxu0 0
    %977 = vmatpush1.bf16.msra.mxu0 0
    %978 = vmatprep.subr.bf16.mxu0 0
    %979 = vmatpush1.bf16.msra.mxu0 0
    %980 = vmatprep.subr.bf16.mxu0 0
    %981 = vmatpush1.bf16.msra.mxu0 %v964
    %982 = vmatprep.subr.bf16.mxu0 0
    %983 = vmatpush2.bf16.msra.mxu0 0
    %984 = vmatprep.subr.bf16.mxu0 0
    %985 = vmatpush2.bf16.msra.mxu0 0
    %986 = vmatprep.subr.bf16.mxu0 0
    %987 = vmatpush2.bf16.msra.mxu0 0
    %988 = vmatprep.subr.bf16.mxu0 0
    %989 = vmatpush2.bf16.msra.mxu0 0
    %990 = vmatprep.subr.bf16.mxu0 0
    %991 = vmatpush2.bf16.msra.mxu0 0
    %992 = vmatprep.subr.bf16.mxu0 0
    %993 = vmatpush2.bf16.msra.mxu0 0
    %994 = vmatprep.subr.bf16.mxu0 0
    %995 = vmatpush2.bf16.msra.mxu0 0
    %996 = vmatprep.subr.bf16.mxu0 0
    %997 = vmatpush2.bf16.msra.mxu0 0
    %998 = vmatprep.mubr.bf16.mxu0 0
    %999 = vmatmul.mubr.bf16.gmra.mxu0 %v961
    %v1000 = vpop.f32.mrf.mxu0
    %v1001 = vadd.f32 0.0, %v1000
    %v1002 = vpop.f32.mrf.mxu0
    %v1003 = vpop.f32.mrf.mxu0
    %v1004 = vpop.f32.mrf.mxu0
    %1005 = vdwg.mxu0
    %1006 = vrot.lane.b32.xlu0 %v166, 64
    %v1007 = vpop.permute.xlu0 %1006
    %v1009 = vsel %vm179, %v899, 0
    %v1012 = vsel %vm914, %v1007, 0
    %1014 = vmatprep.subr.bf16.mxu0 0
    %1015 = vmatpush1.bf16.msra.mxu0 0
    %1016 = vmatprep.subr.bf16.mxu0 0
    %1017 = vmatpush1.bf16.msra.mxu0 0
    %1018 = vmatprep.subr.bf16.mxu0 0
    %1019 = vmatpush1.bf16.msra.mxu0 0
    %1020 = vmatprep.subr.bf16.mxu0 0
    %1021 = vmatpush1.bf16.msra.mxu0 0
    %1022 = vmatprep.subr.bf16.mxu0 0
    %1023 = vmatpush1.bf16.msra.mxu0 0
    %1024 = vmatprep.subr.bf16.mxu0 0
    %1025 = vmatpush1.bf16.msra.mxu0 0
    %1026 = vmatprep.subr.bf16.mxu0 0
    %1027 = vmatpush1.bf16.msra.mxu0 0
    %1028 = vmatprep.subr.bf16.mxu0 0
    %1029 = vmatpush1.bf16.msra.mxu0 %v1012
    %1030 = vmatprep.subr.bf16.mxu0 0
    %1031 = vmatpush2.bf16.msra.mxu0 0
    %1032 = vmatprep.subr.bf16.mxu0 0
    %1033 = vmatpush2.bf16.msra.mxu0 0
    %1034 = vmatprep.subr.bf16.mxu0 0
    %1035 = vmatpush2.bf16.msra.mxu0 0
    %1036 = vmatprep.subr.bf16.mxu0 0
    %1037 = vmatpush2.bf16.msra.mxu0 0
    %1038 = vmatprep.subr.bf16.mxu0 0
    %1039 = vmatpush2.bf16.msra.mxu0 0
    %1040 = vmatprep.subr.bf16.mxu0 0
    %1041 = vmatpush2.bf16.msra.mxu0 0
    %1042 = vmatprep.subr.bf16.mxu0 0
    %1043 = vmatpush2.bf16.msra.mxu0 0
    %1044 = vmatprep.subr.bf16.mxu0 0
    %1045 = vmatpush2.bf16.msra.mxu0 0
    %1046 = vmatprep.mubr.bf16.mxu0 0
    %1047 = vmatmul.mubr.bf16.gmra.mxu0 %v1009
    %v1048 = vpop.f32.mrf.mxu0
    %v1049 = vadd.f32 0.0, %v1048
    %v1050 = vpop.f32.mrf.mxu0
    %v1051 = vpop.f32.mrf.mxu0
    %v1052 = vpop.f32.mrf.mxu0
    %1053 = vdwg.mxu0
    %1054 = vrot.lane.b32.xlu0 %v167, 64
    %v1055 = vpop.permute.xlu0 %1054
    %v1057 = vsel %vm179, %v900, 0
    %v1060 = vsel %vm914, %v1055, 0
    %1062 = vmatprep.subr.bf16.mxu0 0
    %1063 = vmatpush1.bf16.msra.mxu0 0
    %1064 = vmatprep.subr.bf16.mxu0 0
    %1065 = vmatpush1.bf16.msra.mxu0 0
    %1066 = vmatprep.subr.bf16.mxu0 0
    %1067 = vmatpush1.bf16.msra.mxu0 0
    %1068 = vmatprep.subr.bf16.mxu0 0
    %1069 = vmatpush1.bf16.msra.mxu0 0
    %1070 = vmatprep.subr.bf16.mxu0 0
    %1071 = vmatpush1.bf16.msra.mxu0 0
    %1072 = vmatprep.subr.bf16.mxu0 0
    %1073 = vmatpush1.bf16.msra.mxu0 0
    %1074 = vmatprep.subr.bf16.mxu0 0
    %1075 = vmatpush1.bf16.msra.mxu0 0
    %1076 = vmatprep.subr.bf16.mxu0 0
    %1077 = vmatpush1.bf16.msra.mxu0 %v1060
    %1078 = vmatprep.subr.bf16.mxu0 0
    %1079 = vmatpush2.bf16.msra.mxu0 0
    %1080 = vmatprep.subr.bf16.mxu0 0
    %1081 = vmatpush2.bf16.msra.mxu0 0
    %1082 = vmatprep.subr.bf16.mxu0 0
    %1083 = vmatpush2.bf16.msra.mxu0 0
    %1084 = vmatprep.subr.bf16.mxu0 0
    %1085 = vmatpush2.bf16.msra.mxu0 0
    %1086 = vmatprep.subr.bf16.mxu0 0
    %1087 = vmatpush2.bf16.msra.mxu0 0
    %1088 = vmatprep.subr.bf16.mxu0 0
    %1089 = vmatpush2.bf16.msra.mxu0 0
    %1090 = vmatprep.subr.bf16.mxu0 0
    %1091 = vmatpush2.bf16.msra.mxu0 0
    %1092 = vmatprep.subr.bf16.mxu0 0
    %1093 = vmatpush2.bf16.msra.mxu0 0
    %1094 = vmatprep.mubr.bf16.mxu0 0
    %1095 = vmatmul.mubr.bf16.gmra.mxu0 %v1057
    %v1096 = vpop.f32.mrf.mxu0
    %v1097 = vadd.f32 0.0, %v1096
    %v1098 = vpop.f32.mrf.mxu0
    %v1099 = vpop.f32.mrf.mxu0
    %v1100 = vpop.f32.mrf.mxu0
    %1101 = vdwg.mxu0
    %1102 = vrot.lane.b32.xlu0 %v168, 64
    %v1103 = vpop.permute.xlu0 %1102
    %v1105 = vsel %vm179, %v901, 0
    %v1108 = vsel %vm914, %v1103, 0
    %1110 = vmatprep.subr.bf16.mxu0 0
    %1111 = vmatpush1.bf16.msra.mxu0 0
    %1112 = vmatprep.subr.bf16.mxu0 0
    %1113 = vmatpush1.bf16.msra.mxu0 0
    %1114 = vmatprep.subr.bf16.mxu0 0
    %1115 = vmatpush1.bf16.msra.mxu0 0
    %1116 = vmatprep.subr.bf16.mxu0 0
    %1117 = vmatpush1.bf16.msra.mxu0 0
    %1118 = vmatprep.subr.bf16.mxu0 0
    %1119 = vmatpush1.bf16.msra.mxu0 0
    %1120 = vmatprep.subr.bf16.mxu0 0
    %1121 = vmatpush1.bf16.msra.mxu0 0
    %1122 = vmatprep.subr.bf16.mxu0 0
    %1123 = vmatpush1.bf16.msra.mxu0 0
    %1124 = vmatprep.subr.bf16.mxu0 0
    %1125 = vmatpush1.bf16.msra.mxu0 %v1108
    %1126 = vmatprep.subr.bf16.mxu0 0
    %1127 = vmatpush2.bf16.msra.mxu0 0
    %1128 = vmatprep.subr.bf16.mxu0 0
    %1129 = vmatpush2.bf16.msra.mxu0 0
    %1130 = vmatprep.subr.bf16.mxu0 0
    %1131 = vmatpush2.bf16.msra.mxu0 0
    %1132 = vmatprep.subr.bf16.mxu0 0
    %1133 = vmatpush2.bf16.msra.mxu0 0
    %1134 = vmatprep.subr.bf16.mxu0 0
    %1135 = vmatpush2.bf16.msra.mxu0 0
    %1136 = vmatprep.subr.bf16.mxu0 0
    %1137 = vmatpush2.bf16.msra.mxu0 0
    %1138 = vmatprep.subr.bf16.mxu0 0
    %1139 = vmatpush2.bf16.msra.mxu0 0
    %1140 = vmatprep.subr.bf16.mxu0 0
    %1141 = vmatpush2.bf16.msra.mxu0 0
    %1142 = vmatprep.mubr.bf16.mxu0 0
    %1143 = vmatmul.mubr.bf16.gmra.mxu0 %v1105
    %v1144 = vpop.f32.mrf.mxu0
    %v1145 = vadd.f32 0.0, %v1144
    %v1146 = vpop.f32.mrf.mxu0
    %v1147 = vpop.f32.mrf.mxu0
    %v1148 = vpop.f32.mrf.mxu0
    %1149 = vdwg.mxu0
    %1150 = vrot.lane.b32.xlu0 %v169, 64
    %v1151 = vpop.permute.xlu0 %1150
    %v1153 = vsel %vm179, %v902, 0
    %v1156 = vsel %vm914, %v1151, 0
    %1158 = vmatprep.subr.bf16.mxu0 0
    %1159 = vmatpush1.bf16.msra.mxu0 0
    %1160 = vmatprep.subr.bf16.mxu0 0
    %1161 = vmatpush1.bf16.msra.mxu0 0
    %1162 = vmatprep.subr.bf16.mxu0 0
    %1163 = vmatpush1.bf16.msra.mxu0 0
    %1164 = vmatprep.subr.bf16.mxu0 0
    %1165 = vmatpush1.bf16.msra.mxu0 0
    %1166 = vmatprep.subr.bf16.mxu0 0
    %1167 = vmatpush1.bf16.msra.mxu0 0
    %1168 = vmatprep.subr.bf16.mxu0 0
    %1169 = vmatpush1.bf16.msra.mxu0 0
    %1170 = vmatprep.subr.bf16.mxu0 0
    %1171 = vmatpush1.bf16.msra.mxu0 0
    %1172 = vmatprep.subr.bf16.mxu0 0
    %1173 = vmatpush1.bf16.msra.mxu0 %v1156
    %1174 = vmatprep.subr.bf16.mxu0 0
    %1175 = vmatpush2.bf16.msra.mxu0 0
    %1176 = vmatprep.subr.bf16.mxu0 0
    %1177 = vmatpush2.bf16.msra.mxu0 0
    %1178 = vmatprep.subr.bf16.mxu0 0
    %1179 = vmatpush2.bf16.msra.mxu0 0
    %1180 = vmatprep.subr.bf16.mxu0 0
    %1181 = vmatpush2.bf16.msra.mxu0 0
    %1182 = vmatprep.subr.bf16.mxu0 0
    %1183 = vmatpush2.bf16.msra.mxu0 0
    %1184 = vmatprep.subr.bf16.mxu0 0
    %1185 = vmatpush2.bf16.msra.mxu0 0
    %1186 = vmatprep.subr.bf16.mxu0 0
    %1187 = vmatpush2.bf16.msra.mxu0 0
    %1188 = vmatprep.subr.bf16.mxu0 0
    %1189 = vmatpush2.bf16.msra.mxu0 0
    %1190 = vmatprep.mubr.bf16.mxu0 0
    %1191 = vmatmul.mubr.bf16.gmra.mxu0 %v1153
    %v1192 = vpop.f32.mrf.mxu0
    %v1193 = vadd.f32 0.0, %v1192
    %v1194 = vpop.f32.mrf.mxu0
    %v1195 = vpop.f32.mrf.mxu0
    %v1196 = vpop.f32.mrf.mxu0
    %1197 = vdwg.mxu0
    %1198 = vrot.lane.b32.xlu0 %v170, 64
    %v1199 = vpop.permute.xlu0 %1198
    %v1201 = vsel %vm179, %v903, 0
    %v1204 = vsel %vm914, %v1199, 0
    %1206 = vmatprep.subr.bf16.mxu0 0
    %1207 = vmatpush1.bf16.msra.mxu0 0
    %1208 = vmatprep.subr.bf16.mxu0 0
    %1209 = vmatpush1.bf16.msra.mxu0 0
    %1210 = vmatprep.subr.bf16.mxu0 0
    %1211 = vmatpush1.bf16.msra.mxu0 0
    %1212 = vmatprep.subr.bf16.mxu0 0
    %1213 = vmatpush1.bf16.msra.mxu0 0
    %1214 = vmatprep.subr.bf16.mxu0 0
    %1215 = vmatpush1.bf16.msra.mxu0 0
    %1216 = vmatprep.subr.bf16.mxu0 0
    %1217 = vmatpush1.bf16.msra.mxu0 0
    %1218 = vmatprep.subr.bf16.mxu0 0
    %1219 = vmatpush1.bf16.msra.mxu0 0
    %1220 = vmatprep.subr.bf16.mxu0 0
    %1221 = vmatpush1.bf16.msra.mxu0 %v1204
    %1222 = vmatprep.subr.bf16.mxu0 0
    %1223 = vmatpush2.bf16.msra.mxu0 0
    %1224 = vmatprep.subr.bf16.mxu0 0
    %1225 = vmatpush2.bf16.msra.mxu0 0
    %1226 = vmatprep.subr.bf16.mxu0 0
    %1227 = vmatpush2.bf16.msra.mxu0 0
    %1228 = vmatprep.subr.bf16.mxu0 0
    %1229 = vmatpush2.bf16.msra.mxu0 0
    %1230 = vmatprep.subr.bf16.mxu0 0
    %1231 = vmatpush2.bf16.msra.mxu0 0
    %1232 = vmatprep.subr.bf16.mxu0 0
    %1233 = vmatpush2.bf16.msra.mxu0 0
    %1234 = vmatprep.subr.bf16.mxu0 0
    %1235 = vmatpush2.bf16.msra.mxu0 0
    %1236 = vmatprep.subr.bf16.mxu0 0
    %1237 = vmatpush2.bf16.msra.mxu0 0
    %1238 = vmatprep.mubr.bf16.mxu0 0
    %1239 = vmatmul.mubr.bf16.gmra.mxu0 %v1201
    %v1240 = vpop.f32.mrf.mxu0
    %v1241 = vadd.f32 0.0, %v1240
    %v1242 = vpop.f32.mrf.mxu0
    %v1243 = vpop.f32.mrf.mxu0
    %v1244 = vpop.f32.mrf.mxu0
    %1245 = vdwg.mxu0
    %1246 = vrot.lane.b32.xlu0 %v171, 64
    %v1247 = vpop.permute.xlu0 %1246
    %v1249 = vsel %vm179, %v904, 0
    %v1252 = vsel %vm914, %v1247, 0
    %1254 = vmatprep.subr.bf16.mxu0 0
    %1255 = vmatpush1.bf16.msra.mxu0 0
    %1256 = vmatprep.subr.bf16.mxu0 0
    %1257 = vmatpush1.bf16.msra.mxu0 0
    %1258 = vmatprep.subr.bf16.mxu0 0
    %1259 = vmatpush1.bf16.msra.mxu0 0
    %1260 = vmatprep.subr.bf16.mxu0 0
    %1261 = vmatpush1.bf16.msra.mxu0 0
    %1262 = vmatprep.subr.bf16.mxu0 0
    %1263 = vmatpush1.bf16.msra.mxu0 0
    %1264 = vmatprep.subr.bf16.mxu0 0
    %1265 = vmatpush1.bf16.msra.mxu0 0
    %1266 = vmatprep.subr.bf16.mxu0 0
    %1267 = vmatpush1.bf16.msra.mxu0 0
    %1268 = vmatprep.subr.bf16.mxu0 0
    %1269 = vmatpush1.bf16.msra.mxu0 %v1252
    %1270 = vmatprep.subr.bf16.mxu0 0
    %1271 = vmatpush2.bf16.msra.mxu0 0
    %1272 = vmatprep.subr.bf16.mxu0 0
    %1273 = vmatpush2.bf16.msra.mxu0 0
    %1274 = vmatprep.subr.bf16.mxu0 0
    %1275 = vmatpush2.bf16.msra.mxu0 0
    %1276 = vmatprep.subr.bf16.mxu0 0
    %1277 = vmatpush2.bf16.msra.mxu0 0
    %1278 = vmatprep.subr.bf16.mxu0 0
    %1279 = vmatpush2.bf16.msra.mxu0 0
    %1280 = vmatprep.subr.bf16.mxu0 0
    %1281 = vmatpush2.bf16.msra.mxu0 0
    %1282 = vmatprep.subr.bf16.mxu0 0
    %1283 = vmatpush2.bf16.msra.mxu0 0
    %1284 = vmatprep.subr.bf16.mxu0 0
    %1285 = vmatpush2.bf16.msra.mxu0 0
    %1286 = vmatprep.mubr.bf16.mxu0 0
    %1287 = vmatmul.mubr.bf16.gmra.mxu0 %v1249
    %v1288 = vpop.f32.mrf.mxu0
    %v1289 = vadd.f32 0.0, %v1288
    %v1290 = vpop.f32.mrf.mxu0
    %v1291 = vpop.f32.mrf.mxu0
    %v1292 = vpop.f32.mrf.mxu0
    %1293 = vdwg.mxu0
    %1294 = vrot.lane.b32.xlu0 %v172, 64
    %v1295 = vpop.permute.xlu0 %1294
    %v1297 = vsel %vm179, %v905, 0
    %v1300 = vsel %vm914, %v1295, 0
    %1302 = vmatprep.subr.bf16.mxu0 0
    %1303 = vmatpush1.bf16.msra.mxu0 0
    %1304 = vmatprep.subr.bf16.mxu0 0
    %1305 = vmatpush1.bf16.msra.mxu0 0
    %1306 = vmatprep.subr.bf16.mxu0 0
    %1307 = vmatpush1.bf16.msra.mxu0 0
    %1308 = vmatprep.subr.bf16.mxu0 0
    %1309 = vmatpush1.bf16.msra.mxu0 0
    %1310 = vmatprep.subr.bf16.mxu0 0
    %1311 = vmatpush1.bf16.msra.mxu0 0
    %1312 = vmatprep.subr.bf16.mxu0 0
    %1313 = vmatpush1.bf16.msra.mxu0 0
    %1314 = vmatprep.subr.bf16.mxu0 0
    %1315 = vmatpush1.bf16.msra.mxu0 0
    %1316 = vmatprep.subr.bf16.mxu0 0
    %1317 = vmatpush1.bf16.msra.mxu0 %v1300
    %1318 = vmatprep.subr.bf16.mxu0 0
    %1319 = vmatpush2.bf16.msra.mxu0 0
    %1320 = vmatprep.subr.bf16.mxu0 0
    %1321 = vmatpush2.bf16.msra.mxu0 0
    %1322 = vmatprep.subr.bf16.mxu0 0
    %1323 = vmatpush2.bf16.msra.mxu0 0
    %1324 = vmatprep.subr.bf16.mxu0 0
    %1325 = vmatpush2.bf16.msra.mxu0 0
    %1326 = vmatprep.subr.bf16.mxu0 0
    %1327 = vmatpush2.bf16.msra.mxu0 0
    %1328 = vmatprep.subr.bf16.mxu0 0
    %1329 = vmatpush2.bf16.msra.mxu0 0
    %1330 = vmatprep.subr.bf16.mxu0 0
    %1331 = vmatpush2.bf16.msra.mxu0 0
    %1332 = vmatprep.subr.bf16.mxu0 0
    %1333 = vmatpush2.bf16.msra.mxu0 0
    %1334 = vmatprep.mubr.bf16.mxu0 0
    %1335 = vmatmul.mubr.bf16.gmra.mxu0 %v1297
    %v1336 = vpop.f32.mrf.mxu0
    %v1337 = vadd.f32 0.0, %v1336
    %v1338 = vpop.f32.mrf.mxu0
    %v1339 = vpop.f32.mrf.mxu0
    %v1340 = vpop.f32.mrf.mxu0
    %1341 = vdwg.mxu0
    %1342 = vrot.lane.b32.xlu0 %v173, 64
    %v1343 = vpop.permute.xlu0 %1342
    %v1345 = vsel %vm179, %v906, 0
    %v1348 = vsel %vm914, %v1343, 0
    %1350 = vmatprep.subr.bf16.mxu0 0
    %1351 = vmatpush1.bf16.msra.mxu0 0
    %1352 = vmatprep.subr.bf16.mxu0 0
    %1353 = vmatpush1.bf16.msra.mxu0 0
    %1354 = vmatprep.subr.bf16.mxu0 0
    %1355 = vmatpush1.bf16.msra.mxu0 0
    %1356 = vmatprep.subr.bf16.mxu0 0
    %1357 = vmatpush1.bf16.msra.mxu0 0
    %1358 = vmatprep.subr.bf16.mxu0 0
    %1359 = vmatpush1.bf16.msra.mxu0 0
    %1360 = vmatprep.subr.bf16.mxu0 0
    %1361 = vmatpush1.bf16.msra.mxu0 0
    %1362 = vmatprep.subr.bf16.mxu0 0
    %1363 = vmatpush1.bf16.msra.mxu0 0
    %1364 = vmatprep.subr.bf16.mxu0 0
    %1365 = vmatpush1.bf16.msra.mxu0 %v1348
    %1366 = vmatprep.subr.bf16.mxu0 0
    %1367 = vmatpush2.bf16.msra.mxu0 0
    %1368 = vmatprep.subr.bf16.mxu0 0
    %1369 = vmatpush2.bf16.msra.mxu0 0
    %1370 = vmatprep.subr.bf16.mxu0 0
    %1371 = vmatpush2.bf16.msra.mxu0 0
    %1372 = vmatprep.subr.bf16.mxu0 0
    %1373 = vmatpush2.bf16.msra.mxu0 0
    %1374 = vmatprep.subr.bf16.mxu0 0
    %1375 = vmatpush2.bf16.msra.mxu0 0
    %1376 = vmatprep.subr.bf16.mxu0 0
    %1377 = vmatpush2.bf16.msra.mxu0 0
    %1378 = vmatprep.subr.bf16.mxu0 0
    %1379 = vmatpush2.bf16.msra.mxu0 0
    %1380 = vmatprep.subr.bf16.mxu0 0
    %1381 = vmatpush2.bf16.msra.mxu0 0
    %1382 = vmatprep.mubr.bf16.mxu0 0
    %1383 = vmatmul.mubr.bf16.gmra.mxu0 %v1345
    %v1384 = vpop.f32.mrf.mxu0
    %v1385 = vadd.f32 0.0, %v1384
    %v1386 = vpop.f32.mrf.mxu0
    %v1387 = vpop.f32.mrf.mxu0
    %v1388 = vpop.f32.mrf.mxu0
    %1389 = vdwg.mxu0
    %1390 = vrot.lane.b32.xlu0 %v174, 64
    %v1391 = vpop.permute.xlu0 %1390
    %v1393 = vsel %vm179, %v907, 0
    %v1396 = vsel %vm914, %v1391, 0
    %1398 = vmatprep.subr.bf16.mxu0 0
    %1399 = vmatpush1.bf16.msra.mxu0 0
    %1400 = vmatprep.subr.bf16.mxu0 0
    %1401 = vmatpush1.bf16.msra.mxu0 0
    %1402 = vmatprep.subr.bf16.mxu0 0
    %1403 = vmatpush1.bf16.msra.mxu0 0
    %1404 = vmatprep.subr.bf16.mxu0 0
    %1405 = vmatpush1.bf16.msra.mxu0 0
    %1406 = vmatprep.subr.bf16.mxu0 0
    %1407 = vmatpush1.bf16.msra.mxu0 0
    %1408 = vmatprep.subr.bf16.mxu0 0
    %1409 = vmatpush1.bf16.msra.mxu0 0
    %1410 = vmatprep.subr.bf16.mxu0 0
    %1411 = vmatpush1.bf16.msra.mxu0 0
    %1412 = vmatprep.subr.bf16.mxu0 0
    %1413 = vmatpush1.bf16.msra.mxu0 %v1396
    %1414 = vmatprep.subr.bf16.mxu0 0
    %1415 = vmatpush2.bf16.msra.mxu0 0
    %1416 = vmatprep.subr.bf16.mxu0 0
    %1417 = vmatpush2.bf16.msra.mxu0 0
    %1418 = vmatprep.subr.bf16.mxu0 0
    %1419 = vmatpush2.bf16.msra.mxu0 0
    %1420 = vmatprep.subr.bf16.mxu0 0
    %1421 = vmatpush2.bf16.msra.mxu0 0
    %1422 = vmatprep.subr.bf16.mxu0 0
    %1423 = vmatpush2.bf16.msra.mxu0 0
    %1424 = vmatprep.subr.bf16.mxu0 0
    %1425 = vmatpush2.bf16.msra.mxu0 0
    %1426 = vmatprep.subr.bf16.mxu0 0
    %1427 = vmatpush2.bf16.msra.mxu0 0
    %1428 = vmatprep.subr.bf16.mxu0 0
    %1429 = vmatpush2.bf16.msra.mxu0 0
    %1430 = vmatprep.mubr.bf16.mxu0 0
    %1431 = vmatmul.mubr.bf16.gmra.mxu0 %v1393
    %v1432 = vpop.f32.mrf.mxu0
    %v1433 = vadd.f32 0.0, %v1432
    %v1434 = vpop.f32.mrf.mxu0
    %v1435 = vpop.f32.mrf.mxu0
    %v1436 = vpop.f32.mrf.mxu0
    %1437 = vdwg.mxu0
    %1438 = vrot.lane.b32.xlu0 %v175, 64
    %v1439 = vpop.permute.xlu0 %1438
    %v1441 = vsel %vm179, %v908, 0
    %v1444 = vsel %vm914, %v1439, 0
    %1446 = vmatprep.subr.bf16.mxu0 0
    %1447 = vmatpush1.bf16.msra.mxu0 0
    %1448 = vmatprep.subr.bf16.mxu0 0
    %1449 = vmatpush1.bf16.msra.mxu0 0
    %1450 = vmatprep.subr.bf16.mxu0 0
    %1451 = vmatpush1.bf16.msra.mxu0 0
    %1452 = vmatprep.subr.bf16.mxu0 0
    %1453 = vmatpush1.bf16.msra.mxu0 0
    %1454 = vmatprep.subr.bf16.mxu0 0
    %1455 = vmatpush1.bf16.msra.mxu0 0
    %1456 = vmatprep.subr.bf16.mxu0 0
    %1457 = vmatpush1.bf16.msra.mxu0 0
    %1458 = vmatprep.subr.bf16.mxu0 0
    %1459 = vmatpush1.bf16.msra.mxu0 0
    %1460 = vmatprep.subr.bf16.mxu0 0
    %1461 = vmatpush1.bf16.msra.mxu0 %v1444
    %1462 = vmatprep.subr.bf16.mxu0 0
    %1463 = vmatpush2.bf16.msra.mxu0 0
    %1464 = vmatprep.subr.bf16.mxu0 0
    %1465 = vmatpush2.bf16.msra.mxu0 0
    %1466 = vmatprep.subr.bf16.mxu0 0
    %1467 = vmatpush2.bf16.msra.mxu0 0
    %1468 = vmatprep.subr.bf16.mxu0 0
    %1469 = vmatpush2.bf16.msra.mxu0 0
    %1470 = vmatprep.subr.bf16.mxu0 0
    %1471 = vmatpush2.bf16.msra.mxu0 0
    %1472 = vmatprep.subr.bf16.mxu0 0
    %1473 = vmatpush2.bf16.msra.mxu0 0
    %1474 = vmatprep.subr.bf16.mxu0 0
    %1475 = vmatpush2.bf16.msra.mxu0 0
    %1476 = vmatprep.subr.bf16.mxu0 0
    %1477 = vmatpush2.bf16.msra.mxu0 0
    %1478 = vmatprep.mubr.bf16.mxu0 0
    %1479 = vmatmul.mubr.bf16.gmra.mxu0 %v1441
    %v1480 = vpop.f32.mrf.mxu0
    %v1481 = vadd.f32 0.0, %v1480
    %v1482 = vpop.f32.mrf.mxu0
    %v1483 = vpop.f32.mrf.mxu0
    %v1484 = vpop.f32.mrf.mxu0
    %1485 = vdwg.mxu0
    %1489 = vrot.lane.b32.xlu0 %v1097, 8
    %v1490 = vpop.permute.xlu0 %1489
    %1491 = vrot.lane.b32.xlu0 %v1145, 8
    %v1492 = vpop.permute.xlu0 %1491
    %1493 = vrot.lane.b32.xlu0 %v1193, 8
    %v1494 = vpop.permute.xlu0 %1493
    %1501 = vrot.lane.b32.xlu0 %v1241, 16
    %v1502 = vpop.permute.xlu0 %1501
    %1503 = vrot.lane.b32.xlu0 %v1289, 16
    %v1504 = vpop.permute.xlu0 %1503
    %1505 = vrot.lane.b32.xlu0 %v1337, 16
    %v1506 = vpop.permute.xlu0 %1505
    %1513 = vrot.lane.b32.xlu0 %v1385, 24
    %v1514 = vpop.permute.xlu0 %1513
    %1515 = vrot.lane.b32.xlu0 %v1433, 24
    %v1516 = vpop.permute.xlu0 %1515
    %1517 = vrot.lane.b32.xlu0 %v1481, 24
    %v1518 = vpop.permute.xlu0 %1517
    %v1522 = vsel %vm179, %v953, %v1490
    %v1523 = vsel %vm179, %v1001, %v1492
    %v1524 = vsel %vm179, %v1049, %v1494
    %vm1525 = vcmask 130048
    %v1526 = vsel %vm1525, %v1522, %v1502
    %v1527 = vsel %vm1525, %v1523, %v1504
    %v1528 = vsel %vm1525, %v1524, %v1506
    %vm1529 = vcmask 195584
    %v1530 = vsel %vm1529, %v1526, %v1514
    %v1531 = vsel %vm1529, %v1527, %v1516
    %v1532 = vsel %vm1529, %v1528, %v1518
    %v1533 = vpack.c.bf16 %v1531, %v1530
    %v1534 = vpack.c.bf16 %v1532, %v1532
    %v1535 = vld [vmem:[#allocation2] sm:$0xf]
    %v1536 = vld [vmem:[#allocation2 + $0x4] sm:$0xf]
    %v1537 = vld [vmem:[#allocation2 + $0x8] sm:$0xf]
    %v1538 = vld [vmem:[#allocation2 + $0xc] sm:$0xf]
    %v1539 = vlaneseq
    %v1540 = vshrl.u32 %v1539, 7
    %v1541 = vsub.s32 1, %v1540
    %v1542 = vrot.slane %v56, %v1541
    %v1547 = vunpack.c.l.b16 %v1535
    %v1548 = vunpack.c.l.b16 %v1536
    %v1549 = vunpack.c.l.b16 %v1537
    %v1550 = vunpack.c.l.b16 %v1538
    %v1551 = vpack.c.b16 %v1548, %v1547
    %v1552 = vpack.c.b16 %v1550, %v1549
    %v1556 = vsel %vm79, %v1533, 0
    %v1559 = vsel %vm79, %v1534, 0
    %1561 = vmatprep.subr.bf16.mxu0 0
    %1562 = vmatpush1.bf16.msra.mxu0 0
    %1563 = vmatprep.subr.bf16.mxu0 0
    %1564 = vmatpush1.bf16.msra.mxu0 0
    %1565 = vmatprep.subr.bf16.mxu0 0
    %1566 = vmatpush1.bf16.msra.mxu0 0
    %1567 = vmatprep.subr.bf16.mxu0 0
    %1568 = vmatpush1.bf16.msra.mxu0 0
    %1569 = vmatprep.subr.bf16.mxu0 0
    %1570 = vmatpush1.bf16.msra.mxu0 0
    %1571 = vmatprep.subr.bf16.mxu0 0
    %1572 = vmatpush1.bf16.msra.mxu0 0
    %1573 = vmatprep.subr.bf16.mxu0 0
    %1574 = vmatpush1.bf16.msra.mxu0 %v1552
    %1575 = vmatprep.subr.bf16.mxu0 0
    %1576 = vmatpush1.bf16.msra.mxu0 %v1551
    %1577 = vmatprep.subr.bf16.mxu0 0
    %1578 = vmatpush2.bf16.msra.mxu0 0
    %1579 = vmatprep.subr.bf16.mxu0 0
    %1580 = vmatpush2.bf16.msra.mxu0 0
    %1581 = vmatprep.subr.bf16.mxu0 0
    %1582 = vmatpush2.bf16.msra.mxu0 0
    %1583 = vmatprep.subr.bf16.mxu0 0
    %1584 = vmatpush2.bf16.msra.mxu0 0
    %1585 = vmatprep.subr.bf16.mxu0 0
    %1586 = vmatpush2.bf16.msra.mxu0 0
    %1587 = vmatprep.subr.bf16.mxu0 0
    %1588 = vmatpush2.bf16.msra.mxu0 0
    %1589 = vmatprep.subr.bf16.mxu0 0
    %1590 = vmatpush2.bf16.msra.mxu0 0
    %1591 = vmatprep.subr.bf16.mxu0 0
    %1592 = vmatpush2.bf16.msra.mxu0 0
    %1593 = vmatprep.mubr.bf16.mxu0 0
    %1594 = vmatmul.mubr.bf16.gmra.mxu0 %v1556
    %v1595 = vpop.f32.mrf.mxu0
    %v1596 = vadd.f32 %v1542, %v1595
    %v1597 = vpop.f32.mrf.mxu0
    %v1598 = vpop.f32.mrf.mxu0
    %v1599 = vadd.f32 %v1542, %v1598
    %v1600 = vpop.f32.mrf.mxu0
    %1601 = vmatprep.mubr.bf16.mxu0 0
    %1602 = vmatmul.mubr.bf16.gmra.mxu0 %v1559
    %v1603 = vpop.f32.mrf.mxu0
    %v1604 = vadd.f32 %v1542, %v1603
    %v1605 = vpop.f32.mrf.mxu0
    %v1606 = vpop.f32.mrf.mxu0
    %v1607 = vpop.f32.mrf.mxu0
    %1608 = vdwg.mxu0
    %v1609 = vadd.f32 %v53, %v1596
    %v1610 = vadd.f32 %v54, %v1599
    %v1611 = vadd.f32 %v55, %v1604
    %v1612 = vsel %vm79, %v1609, 0.0
    %1613 = vadd.xlane.f32.xlu0 %v1612
    %v1614 = vpop.xlane.xlu0 %1613
    %v1615 = vsel %vm79, %v1610, 0.0
    %1616 = vadd.xlane.f32.xlu0 %v1615
    %v1617 = vpop.xlane.xlu0 %1616
    %v1618 = vsel %vm79, %v1611, 0.0
    %1619 = vadd.xlane.f32.xlu0 %v1618
    %v1620 = vpop.xlane.xlu0 %1619
    %v1621 = vrcp.pop 32.0
    %v1622 = vmul.f32 %v1614, %v1621
    %v1623 = vmul.f32 %v1617, %v1621
    %v1624 = vmul.f32 %v1620, %v1621
    %v1625 = vsub.f32 %v1609, %v1622
    %v1626 = vsub.f32 %v1610, %v1623
    %v1627 = vsub.f32 %v1611, %v1624
    %v1628 = vmul.f32 %v1625, %v1625
    %v1629 = vmul.f32 %v1626, %v1626
    %v1630 = vmul.f32 %v1627, %v1627
    %v1631 = vsel %vm79, %v1628, 0.0
    %1632 = vadd.xlane.f32.xlu0 %v1631
    %v1633 = vpop.xlane.xlu0 %1632
    %v1634 = vsel %vm79, %v1629, 0.0
    %1635 = vadd.xlane.f32.xlu0 %v1634
    %v1636 = vpop.xlane.xlu0 %1635
    %v1637 = vsel %vm79, %v1630, 0.0
    %1638 = vadd.xlane.f32.xlu0 %v1637
    %v1639 = vpop.xlane.xlu0 %1638
    %v1640 = vmul.f32 %v1633, %v1621
    %v1641 = vmul.f32 %v1636, %v1621
    %v1642 = vmul.f32 %v1639, %v1621
    %v1643 = vadd.f32 %v1640, 1e-05
    %v1644 = vadd.f32 %v1641, 1e-05
    %v1645 = vadd.f32 %v1642, 1e-05
    %v1646 = vrsqrt.pop %v1643
    %v1647 = vrsqrt.pop %v1644
    %v1648 = vrsqrt.pop %v1645
    %v1649 = vmul.f32 %v1625, %v1646
    %v1650 = vmul.f32 %v1626, %v1647
    %v1651 = vmul.f32 %v1627, %v1648
    %v1652 = vlaneseq
    %v1653 = vshrl.u32 %v1652, 7
    %v1654 = vsub.s32 2, %v1653
    %v1655 = vrot.slane %v56, %v1654
    %v1656 = vmul.f32 %v1649, %v1655
    %v1657 = vmul.f32 %v1650, %v1655
    %v1658 = vmul.f32 %v1651, %v1655
    %v1659 = vlaneseq
    %v1660 = vshrl.u32 %v1659, 7
    %v1661 = vsub.s32 3, %v1660
    %v1662 = vrot.slane %v56, %v1661
    %v1663 = vadd.f32 %v1656, %v1662
    %v1664 = vadd.f32 %v1657, %v1662
    %v1665 = vadd.f32 %v1658, %v1662
    %v1666 = vpack.c.bf16 %v1664, %v1663
    %v1667 = vpack.c.bf16 %v1665, %v1665
    %v1668 = vld [vmem:[#allocation5] sm:$0xf]
    %v1669 = vld [vmem:[#allocation5 + $0x4] sm:$0xf]
    %v1670 = vld [vmem:[#allocation5 + $0x8] sm:$0xf]
    %v1671 = vld [vmem:[#allocation5 + $0xc] sm:$0xf]
    %v1672 = vlaneseq
    %v1673 = vshrl.u32 %v1672, 7
    %v1674 = vsub.s32 4, %v1673
    %v1675 = vrot.slane %v56, %v1674
    %v1680 = vunpack.c.l.b16 %v1668
    %v1681 = vunpack.c.l.b16 %v1669
    %v1682 = vunpack.c.l.b16 %v1670
    %v1683 = vunpack.c.l.b16 %v1671
    %v1684 = vpack.c.b16 %v1681, %v1680
    %v1685 = vpack.c.b16 %v1683, %v1682
    %v1689 = vsel %vm79, %v1666, 0
    %v1692 = vsel %vm79, %v1667, 0
    %1694 = vmatprep.subr.bf16.mxu0 0
    %1695 = vmatpush1.bf16.msra.mxu0 0
    %1696 = vmatprep.subr.bf16.mxu0 0
    %1697 = vmatpush1.bf16.msra.mxu0 0
    %1698 = vmatprep.subr.bf16.mxu0 0
    %1699 = vmatpush1.bf16.msra.mxu0 0
    %1700 = vmatprep.subr.bf16.mxu0 0
    %1701 = vmatpush1.bf16.msra.mxu0 0
    %1702 = vmatprep.subr.bf16.mxu0 0
    %1703 = vmatpush1.bf16.msra.mxu0 0
    %1704 = vmatprep.subr.bf16.mxu0 0
    %1705 = vmatpush1.bf16.msra.mxu0 0
    %1706 = vmatprep.subr.bf16.mxu0 0
    %1707 = vmatpush1.bf16.msra.mxu0 %v1685
    %1708 = vmatprep.subr.bf16.mxu0 0
    %1709 = vmatpush1.bf16.msra.mxu0 %v1684
    %1710 = vmatprep.subr.bf16.mxu0 0
    %1711 = vmatpush2.bf16.msra.mxu0 0
    %1712 = vmatprep.subr.bf16.mxu0 0
    %1713 = vmatpush2.bf16.msra.mxu0 0
    %1714 = vmatprep.subr.bf16.mxu0 0
    %1715 = vmatpush2.bf16.msra.mxu0 0
    %1716 = vmatprep.subr.bf16.mxu0 0
    %1717 = vmatpush2.bf16.msra.mxu0 0
    %1718 = vmatprep.subr.bf16.mxu0 0
    %1719 = vmatpush2.bf16.msra.mxu0 0
    %1720 = vmatprep.subr.bf16.mxu0 0
    %1721 = vmatpush2.bf16.msra.mxu0 0
    %1722 = vmatprep.subr.bf16.mxu0 0
    %1723 = vmatpush2.bf16.msra.mxu0 0
    %1724 = vmatprep.subr.bf16.mxu0 0
    %1725 = vmatpush2.bf16.msra.mxu0 0
    %1726 = vmatprep.mubr.bf16.mxu0 0
    %1727 = vmatmul.mubr.bf16.gmra.mxu0 %v1689
    %v1728 = vpop.f32.mrf.mxu0
    %v1729 = vadd.f32 %v1675, %v1728
    %v1730 = vpop.f32.mrf.mxu0
    %v1731 = vpop.f32.mrf.mxu0
    %v1732 = vadd.f32 %v1675, %v1731
    %v1733 = vpop.f32.mrf.mxu0
    %1734 = vmatprep.mubr.bf16.mxu0 0
    %1735 = vmatmul.mubr.bf16.gmra.mxu0 %v1692
    %v1736 = vpop.f32.mrf.mxu0
    %v1737 = vadd.f32 %v1675, %v1736
    %v1738 = vpop.f32.mrf.mxu0
    %v1739 = vpop.f32.mrf.mxu0
    %v1740 = vpop.f32.mrf.mxu0
    %1741 = vdwg.mxu0
    %v1742 = vmax.f32 %v1729, 0.0
    %v1743 = vmax.f32 %v1732, 0.0
    %v1744 = vmax.f32 %v1737, 0.0
    %v1745 = vpack.c.bf16 %v1743, %v1742
    %v1746 = vpack.c.bf16 %v1744, %v1744
    %v1747 = vld [vmem:[%s4] sm:$0xf]
    %v1748 = vld [vmem:[%s4 + $0x4] sm:$0xf]
    %v1749 = vld [vmem:[%s4 + $0x8] sm:$0xf]
    %v1750 = vld [vmem:[%s4 + $0xc] sm:$0xf]
    %v1751 = vld [vmem:[%s4 + $0x10] sm:$0xf]
    %v1752 = vld [vmem:[%s4 + $0x14] sm:$0xf]
    %v1753 = vld [vmem:[%s4 + $0x18] sm:$0xf]
    %v1754 = vld [vmem:[%s4 + $0x1c] sm:$0xf]
    %v1755 = vlaneseq
    %v1756 = vshrl.u32 %v1755, 7
    %v1757 = vsub.s32 5, %v1756
    %v1758 = vrot.slane %v56, %v1757
    %v1767 = vunpack.c.l.b16 %v1747
    %v1768 = vunpack.c.l.b16 %v1748
    %v1769 = vunpack.c.l.b16 %v1749
    %v1770 = vunpack.c.l.b16 %v1750
    %v1771 = vunpack.c.l.b16 %v1751
    %v1772 = vunpack.c.l.b16 %v1752
    %v1773 = vunpack.c.l.b16 %v1753
    %v1774 = vunpack.c.l.b16 %v1754
    %v1775 = vpack.c.b16 %v1768, %v1767
    %v1776 = vpack.c.b16 %v1770, %v1769
    %v1777 = vpack.c.b16 %v1772, %v1771
    %v1778 = vpack.c.b16 %v1774, %v1773
    %vm1783 = vcmask 523264
    %v1785 = vsel %vm1783, %v1745, 0
    %v1788 = vsel %vm1783, %v1746, 0
    %1790 = vmatprep.subr.bf16.mxu0 0
    %1791 = vmatpush1.bf16.msra.mxu0 0
    %1792 = vmatprep.subr.bf16.mxu0 0
    %1793 = vmatpush1.bf16.msra.mxu0 0
    %1794 = vmatprep.subr.bf16.mxu0 0
    %1795 = vmatpush1.bf16.msra.mxu0 0
    %1796 = vmatprep.subr.bf16.mxu0 0
    %1797 = vmatpush1.bf16.msra.mxu0 0
    %1798 = vmatprep.subr.bf16.mxu0 0
    %1799 = vmatpush1.bf16.msra.mxu0 %v1778
    %1800 = vmatprep.subr.bf16.mxu0 0
    %1801 = vmatpush1.bf16.msra.mxu0 %v1777
    %1802 = vmatprep.subr.bf16.mxu0 0
    %1803 = vmatpush1.bf16.msra.mxu0 %v1776
    %1804 = vmatprep.subr.bf16.mxu0 0
    %1805 = vmatpush1.bf16.msra.mxu0 %v1775
    %1806 = vmatprep.subr.bf16.mxu0 0
    %1807 = vmatpush2.bf16.msra.mxu0 0
    %1808 = vmatprep.subr.bf16.mxu0 0
    %1809 = vmatpush2.bf16.msra.mxu0 0
    %1810 = vmatprep.subr.bf16.mxu0 0
    %1811 = vmatpush2.bf16.msra.mxu0 0
    %1812 = vmatprep.subr.bf16.mxu0 0
    %1813 = vmatpush2.bf16.msra.mxu0 0
    %1814 = vmatprep.subr.bf16.mxu0 0
    %1815 = vmatpush2.bf16.msra.mxu0 0
    %1816 = vmatprep.subr.bf16.mxu0 0
    %1817 = vmatpush2.bf16.msra.mxu0 0
    %1818 = vmatprep.subr.bf16.mxu0 0
    %1819 = vmatpush2.bf16.msra.mxu0 0
    %1820 = vmatprep.subr.bf16.mxu0 0
    %1821 = vmatpush2.bf16.msra.mxu0 0
    %1822 = vmatprep.mubr.bf16.mxu0 0
    %1823 = vmatmul.mubr.bf16.gmra.mxu0 %v1785
    %v1824 = vpop.f32.mrf.mxu0
    %v1825 = vadd.f32 %v1758, %v1824
    %v1826 = vpop.f32.mrf.mxu0
    %v1827 = vpop.f32.mrf.mxu0
    %v1828 = vadd.f32 %v1758, %v1827
    %v1829 = vpop.f32.mrf.mxu0
    %1830 = vmatprep.mubr.bf16.mxu0 0
    %1831 = vmatmul.mubr.bf16.gmra.mxu0 %v1788
    %v1832 = vpop.f32.mrf.mxu0
    %v1833 = vadd.f32 %v1758, %v1832
    %v1834 = vpop.f32.mrf.mxu0
    %v1835 = vpop.f32.mrf.mxu0
    %v1836 = vpop.f32.mrf.mxu0
    %1837 = vdwg.mxu0
    %v1838 = vadd.f32 %v1663, %v1825
    %v1839 = vadd.f32 %v1664, %v1828
    %v1840 = vadd.f32 %v1665, %v1833
    %v1841 = vsel %vm79, %v1838, 0.0
    %1842 = vadd.xlane.f32.xlu0 %v1841
    %v1843 = vpop.xlane.xlu0 %1842
    %v1844 = vsel %vm79, %v1839, 0.0
    %1845 = vadd.xlane.f32.xlu0 %v1844
    %v1846 = vpop.xlane.xlu0 %1845
    %v1847 = vsel %vm79, %v1840, 0.0
    %1848 = vadd.xlane.f32.xlu0 %v1847
    %v1849 = vpop.xlane.xlu0 %1848
    %v1850 = vmul.f32 %v1843, %v1621
    %v1851 = vmul.f32 %v1846, %v1621
    %v1852 = vmul.f32 %v1849, %v1621
    %v1853 = vsub.f32 %v1838, %v1850
    %v1854 = vsub.f32 %v1839, %v1851
    %v1855 = vsub.f32 %v1840, %v1852
    %v1856 = vmul.f32 %v1853, %v1853
    %v1857 = vmul.f32 %v1854, %v1854
    %v1858 = vmul.f32 %v1855, %v1855
    %v1859 = vsel %vm79, %v1856, 0.0
    %1860 = vadd.xlane.f32.xlu0 %v1859
    %v1861 = vpop.xlane.xlu0 %1860
    %v1862 = vsel %vm79, %v1857, 0.0
    %1863 = vadd.xlane.f32.xlu0 %v1862
    %v1864 = vpop.xlane.xlu0 %1863
    %v1865 = vsel %vm79, %v1858, 0.0
    %1866 = vadd.xlane.f32.xlu0 %v1865
    %v1867 = vpop.xlane.xlu0 %1866
    %v1868 = vmul.f32 %v1861, %v1621
    %v1869 = vmul.f32 %v1864, %v1621
    %v1870 = vmul.f32 %v1867, %v1621
    %v1871 = vadd.f32 %v1868, 1e-05
    %v1872 = vadd.f32 %v1869, 1e-05
    %v1873 = vadd.f32 %v1870, 1e-05
    %v1874 = vrsqrt.pop %v1871
    %v1875 = vrsqrt.pop %v1872
    %v1876 = vrsqrt.pop %v1873
    %v1877 = vmul.f32 %v1853, %v1874
    %v1878 = vmul.f32 %v1854, %v1875
    %v1879 = vmul.f32 %v1855, %v1876
    %v1880 = vlaneseq
    %v1881 = vshrl.u32 %v1880, 7
    %v1882 = vsub.s32 6, %v1881
    %v1883 = vrot.slane %v56, %v1882
    %v1884 = vmul.f32 %v1877, %v1883
    %v1885 = vmul.f32 %v1878, %v1883
    %v1886 = vmul.f32 %v1879, %v1883
    %v1887 = vsel %vm79, %v1884, 0.0
    %1888 = vadd.xlane.f32.xlu0 %v1887
    %v1889 = vpop.xlane.xlu0 %1888
    %v1890 = vsel %vm79, %v1885, 0.0
    %1891 = vadd.xlane.f32.xlu0 %v1890
    %v1892 = vpop.xlane.xlu0 %1891
    %v1893 = vsel %vm79, %v1886, 0.0
    %1894 = vadd.xlane.f32.xlu0 %v1893
    %v1895 = vpop.xlane.xlu0 %1894
    %v1896 = vlaneseq
    %v1897 = vshrl.u32 %v1896, 7
    %v1898 = vsub.s32 7, %v1897
    %v1899 = vrot.slane %v56, %v1898
    %v1900 = vadd.f32 %v1889, %v1899
    %v1901 = vadd.f32 %v1892, %v1899
    %v1902 = vadd.f32 %v1895, %v1899
    %1903 = vxpose.xlu0.b32.start [1/16] %v1900, 128
    %1904 = vxpose.xlu0.b32.cont [2/16] %v1901, 128
    %1905 = vxpose.xlu0.b32.cont [3/16] %v1902, 128
    %1906 = vxpose.xlu0.b32.cont [4/16] 0.0, 128
    %1907 = vxpose.xlu0.b32.cont [5/16] 0.0, 128
    %1908 = vxpose.xlu0.b32.cont [6/16] 0.0, 128
    %1909 = vxpose.xlu0.b32.cont [7/16] 0.0, 128
    %1910 = vxpose.xlu0.b32.cont [8/16] 0.0, 128
    %1911 = vxpose.xlu0.b32.cont [9/16] 0.0, 128
    %1912 = vxpose.xlu0.b32.cont [10/16] 0.0, 128
    %1913 = vxpose.xlu0.b32.cont [11/16] 0.0, 128
    %1914 = vxpose.xlu0.b32.cont [12/16] 0.0, 128
    %1915 = vxpose.xlu0.b32.cont [13/16] 0.0, 128
    %1916 = vxpose.xlu0.b32.cont [14/16] 0.0, 128
    %1917 = vxpose.xlu0.b32.cont [15/16] 0.0, 128
    %1918 = vxpose.xlu0.b32.end [16/16] 0.0, 128
    %v1919 = vpop.trf.xlu0
    %v1920 = vpop.trf.xlu0
    %v1921 = vpop.trf.xlu0
    %v1922 = vpop.trf.xlu0
    %v1923 = vpop.trf.xlu0
    %v1924 = vpop.trf.xlu0
    %v1925 = vpop.trf.xlu0
    %v1926 = vpop.trf.xlu0
    %v1927 = vpop.trf.xlu0
    %v1928 = vpop.trf.xlu0
    %v1929 = vpop.trf.xlu0
    %v1930 = vpop.trf.xlu0
    %v1931 = vpop.trf.xlu0
    %v1932 = vpop.trf.xlu0
    %v1933 = vpop.trf.xlu0
    %v1934 = vpop.trf.xlu0
    %vm1935 = vcmask 188416
    %1936 = vst.msk [vmem:[#allocation7] sm:$0x1] %vm1935, %v1919
    // Predicated region
    $region34: #{tpu_custom_call.1} parent=1 // pred_check
      _
    $region35: #{tpu_custom_call.1} parent=1 // pred_check_branch
      %1938 = sbr.rel (0) target = $region37
    $region36: #{tpu_custom_call.1} parent=1 // pred_region
      %s1940 = ssub.s32 16, 16
      %1941 = vsyncadd [#allocation4], %s1940
      %s1943 = sshll.u32 [#allocation7], 4
      %s1944 = int_to_ptr.vmem [resolvable:$true] %s1943
      %1946 = dma.vmem_to_hbm [thread:$0]  %s1944, 16, %s6, [#allocation4]
    $region37: #{tpu_custom_call.1} parent=1 // pred_fallthru
      _
    // Predicated region
    $region38: #{tpu_custom_call.1} parent=1 // pred_check
      _
    $region39: #{tpu_custom_call.1} parent=1 // pred_check_branch
      %1948 = sbr.rel (0) target = $region41
    $region40: #{tpu_custom_call.1} parent=1 // pred_region
      %1949 = dma.done [#allocation4], 16
    $region41: #{tpu_custom_call.1} parent=1 // pred_fallthru
      _
    %1950 = vsyncpa [#allocation3], 1
    %1951 = vsyncpa [#allocation6], 1
    %1952 = vsyncpa [#allocation4], 1

</llo_original>
